<compile_context>
chip_gen: v5e
topology: v5e:2x2
jax: 0.10.0
libtpu: 0.0.40
codegen_flags: <defaults>
</compile_context>

<pallas_src>
import jax
import jax.numpy as jnp
import numpy as np
from jax.experimental import pallas as pl
from jax.experimental.pallas import tpu as pltpu


_LANE = 128       # lane width (last-dim tiling unit)
_TM_MAX = 1024    # max im2col rows per grid step (perf review: 1024-2048)

# (name, kh, kw, stride, cout) -- static layer config, matches
# Conv2d(4,32,k=8,s=4) -> Conv2d(32,64,k=4,s=2) -> Conv2d(64,64,k=3,s=1).
_LAYER_CFG = (
    ("conv1", 8, 8, 4, 32),
    ("conv2", 4, 4, 2, 64),
    ("conv3", 3, 3, 1, 64),
)


def _round_up(x, m):
    return (x + m - 1) // m * m


# ----------------------------------------------------------------------------
# Pallas kernel: fused GEMM + bias + ReLU (the per-layer conv hot path)
# ----------------------------------------------------------------------------
def _gemm_bias_relu_kernel(x_ref, w_ref, b_ref, o_ref):
    # x_ref: (TM, Kp)  bf16 patch tile, streamed over the grid axis
    # w_ref: (Kp, Np)  bf16 weights, constant block index -> VMEM-resident
    # b_ref: (1,  Np)  f32 bias,     constant block index -> VMEM-resident
    # o_ref: (TM, Np)  bf16 lane-dense output tile (Np multiple of 128)
    acc = jnp.dot(x_ref[...], w_ref[...], preferred_element_type=jnp.float32)
    o_ref[...] = jnp.maximum(acc + b_ref[...], 0.0).astype(o_ref.dtype)


def gemm_bias_relu(patches, w_packed, b_packed, cout):
    """ReLU(patches @ W + b) with an M-tiled, lane-dense Pallas GEMM.

    patches:  (M, K)   bf16 im2col rows
    w_packed: (Kp, Np) bf16, Kp = round_up(K, 128), Np = round_up(cout, 128)
    b_packed: (1, Np)  f32
    Returns:  (M, cout) bf16
    """
    M, K = patches.shape
    kp, np_ = w_packed.shape
    assert kp == _round_up(K, _LANE) and np_ % _LANE == 0

    # M tiling: tiles as large as possible (<= _TM_MAX), tm a multiple of 16
    # (bf16 sublane packing), and an even grid length so v7x's two
    # TensorCores both get work on the "parallel" axis.
    num_pairs = max(1, -(-M // (2 * _TM_MAX)))
    grid = 2 * num_pairs
    tm = _round_up(-(-M // grid), 16)
    mp = tm * grid

    # Zero-pad rows (sliced off below) and the K remainder (only layer 3
    # needs it: 576 -> 640); layers 1/2 already have K % 128 == 0.
    x_p = jnp.pad(patches, ((0, mp - M), (0, kp - K)))

    out = pl.pallas_call(
        _gemm_bias_relu_kernel,
        out_shape=jax.ShapeDtypeStruct((mp, np_), jnp.bfloat16),
        grid=(grid,),
        in_specs=[
            pl.BlockSpec((tm, kp), lambda i: (i, 0)),   # streamed patch tiles
            pl.BlockSpec((kp, np_), lambda i: (0, 0)),  # resident weights
            pl.BlockSpec((1, np_), lambda i: (0, 0)),   # resident bias
        ],
        out_specs=pl.BlockSpec((tm, np_), lambda i: (i, 0)),
        compiler_params=pltpu.CompilerParams(
            dimension_semantics=("parallel",),          # megacore-shardable
            vmem_limit_bytes=48 * 1024 * 1024,          # safe on v5e/v6e/v7x
        ),
    )(x_p, w_packed, b_packed)
    return out[:M, :cout]


# ----------------------------------------------------------------------------
# Glue: im2col (static slices / reshapes, fused by XLA) + layer composition
# ----------------------------------------------------------------------------
def _im2col(x_nhwc, kh, kw, stride):
    n, h, w, c = x_nhwc.shape
    oh = (h - kh) // stride + 1
    ow = (w - kw) // stride + 1
    cols = []
    for i in range(kh):
        for j in range(kw):
            cols.append(
                x_nhwc[:, i:i + stride * oh:stride, j:j + stride * ow:stride, :])
    patches = jnp.concatenate(cols, axis=-1)            # (n, oh, ow, kh*kw*c)
    return patches.reshape(n * oh * ow, kh * kw * c), (n, oh, ow)


def encoder_forward(packed_params, x_nchw):
    # NCHW -> NHWC and cast to bf16 BEFORE im2col: the concatenate/pad glue
    # and the kernel's input DMAs all move half the bytes.
    x = jnp.transpose(x_nchw, (0, 2, 3, 1)).astype(jnp.bfloat16)
    for name, kh, kw, stride, cout in _LAYER_CFG:
        w_p, b_p = packed_params[name]
        cols, (n, oh, ow) = _im2col(x, kh, kw, stride)
        y = gemm_bias_relu(cols, w_p, b_p, cout)        # Pallas hot path
        x = y.reshape(n, oh, ow, cout)
    x = jnp.transpose(x, (0, 3, 1, 2))                  # back to NCHW
    # Flatten matches PyTorch's `cnn(x).reshape(-1, repr_dim)` element order.
    return x.reshape(x.shape[0], -1).astype(jnp.float32)


# ----------------------------------------------------------------------------
# Parameters: raw f32 conv weights + one-time Pallas packing
# ----------------------------------------------------------------------------
def init_params(key):
    """Raw f32 parameters with the Encoder's conv shapes (OIHW weight, bias)."""
    def conv_init(k, cout, cin, kh, kw):
        fan_in = cin * kh * kw
        scale = (2.0 / fan_in) ** 0.5
        w = scale * jax.random.normal(k, (cout, cin, kh, kw), jnp.float32)
        b = jnp.zeros((cout,), jnp.float32)
        return w, b

    k1, k2, k3 = jax.random.split(key, 3)
    return {
        "conv1": conv_init(k1, 32, 4, 8, 8),
        "conv2": conv_init(k2, 64, 32, 4, 4),
        "conv3": conv_init(k3, 64, 64, 3, 3),
    }


def pack_params(raw_params):
    """One-time packing: OIHW -> (K, Cout), bf16 cast, zero-pad to 128 tiles.

    Done once at init so no per-forward transposes/casts/pads remain.
    """
    packed = {}
    for name, (w, b) in raw_params.items():
        cout, cin, kh, kw = w.shape
        k = kh * kw * cin
        kp = _round_up(k, _LANE)
        np_ = _round_up(cout, _LANE)
        # (O,I,KH,KW) -> (KH,KW,I,O) -> (K, Cout); matches _im2col's
        # ((i*kw + j)*cin + c) column order.
        w_mat = jnp.transpose(w, (2, 3, 1, 0)).reshape(k, cout)
        w_p = jnp.pad(w_mat.astype(jnp.bfloat16),
                      ((0, kp - k), (0, np_ - cout)))
        b_p = jnp.pad(b.astype(jnp.float32).reshape(1, cout),
                      ((0, 0), (0, np_ - cout)))
        packed[name] = (w_p, b_p)
    return packed


# Pure-JAX f32 reference (sanity cross-check only).
def _ref_forward(raw_params, x_nchw):
    x = x_nchw
    for name, kh, kw, stride, cout in _LAYER_CFG:
        w, b = raw_params[name]
        x = jax.lax.conv_general_dilated(
            x, w, window_strides=(stride, stride), padding="VALID",
            dimension_numbers=("NCHW", "OIHW", "NCHW"))
        x = jnp.maximum(x + b[None, :, None, None], 0.0)
    return x.reshape(x.shape[0], -1)


if __name__ == "__main__":
    # 36x36 spatial input keeps the conv chain valid: 36 -> 8 -> 3 -> 1
    # (84x84 in the original gives 20 -> 9 -> 7; same code path).
    # N=16 makes layer-1 im2col M = 16*8*8 = 1024 rows, exercising the
    # two-tile (grid=2, tm=512) Pallas path.
    N, C, H, W = 16, 4, 36, 36
    key = jax.random.PRNGKey(0)
    kx, kparam = jax.random.split(key)
    x = jax.random.normal(kx, (N, C, H, W), jnp.float32)

    raw_params = init_params(kparam)
    packed_params = pack_params(raw_params)   # one-time weight packing

    fwd = jax.jit(encoder_forward)
    out = jax.block_until_ready(fwd(packed_params, x))

    ref = jax.block_until_ready(_ref_forward(raw_params, x))
    assert out.shape == ref.shape, (out.shape, ref.shape)
    # Tolerance reflects bf16 MXU operands / bf16 inter-layer activations
    # (f32 accumulation) vs the f32 reference.
    np.testing.assert_allclose(np.asarray(out), np.asarray(ref),
                               rtol=4e-2, atol=4e-2)
    print("KERNEL_OK")
</pallas_src>

<mosaic_0001>
module attributes {stable_mosaic.version = 11 : i64} {
  func.func @_gemm_bias_relu_kernel(%arg0: i32, %arg1: memref<512x256xbf16, #tpu.memory_space<vmem>>, %arg2: memref<256x128xbf16, #tpu.memory_space<vmem>>, %arg3: memref<1x128xf32, #tpu.memory_space<vmem>>, %arg4: memref<512x128xbf16, #tpu.memory_space<vmem>>) attributes {dimension_semantics = [#tpu.dimension_semantics<parallel>], iteration_bounds = array<i64: 2>, scalar_prefetch = 0 : i64, scratch_operands = 0 : i64, tpu.core_type = #tpu.core_type<tc>, window_params = [{transform_indices = @transform_0, window_bounds = array<i64: 512, 256>}, {pipeline_mode = #tpu.pipeline_mode<synchronous>, transform_indices = @transform_1, window_bounds = array<i64: 256, 128>}, {pipeline_mode = #tpu.pipeline_mode<synchronous>, transform_indices = @transform_2, window_bounds = array<i64: 1, 128>}, {transform_indices = @transform_3, window_bounds = array<i64: 512, 128>}]} {
    %c0 = arith.constant 0 : index
    %c0_0 = arith.constant 0 : index
    %0 = vector.load %arg1[%c0, %c0_0] : memref<512x256xbf16, #tpu.memory_space<vmem>>, vector<512x256xbf16>
    %c0_1 = arith.constant 0 : index
    %c0_2 = arith.constant 0 : index
    %1 = vector.load %arg2[%c0_1, %c0_2] : memref<256x128xbf16, #tpu.memory_space<vmem>>, vector<256x128xbf16>
    %cst = arith.constant dense<0.000000e+00> : vector<512x128xf32>
    %2 = tpu.matmul %0, %1, %cst {dimension_numbers = #tpu.dot_dimension_numbers<[1], [0], [0], [1], [0, 0, 1, 1], [], []>} : vector<512x256xbf16>, vector<256x128xbf16>, vector<512x128xf32> -> vector<512x128xf32>
    %c0_3 = arith.constant 0 : index
    %c0_4 = arith.constant 0 : index
    %3 = vector.load %arg3[%c0_3, %c0_4] : memref<1x128xf32, #tpu.memory_space<vmem>>, vector<1x128xf32>
    %4 = vector.broadcast %3 : vector<1x128xf32> to vector<512x128xf32>
    %5 = arith.addf %2, %4 : vector<512x128xf32>
    %cst_5 = arith.constant 0.000000e+00 : f32
    %6 = vector.broadcast %cst_5 : f32 to vector<512x128xf32>
    %7 = arith.maximumf %5, %6 : vector<512x128xf32>
    %8 = arith.truncf %7 : vector<512x128xf32> to vector<512x128xbf16>
    %c0_6 = arith.constant 0 : index
    %c0_7 = arith.constant 0 : index
    %9 = vector.load %arg4[%c0_6, %c0_7] : memref<512x128xbf16, #tpu.memory_space<vmem>>, vector<512x128xbf16>
    tpu.vector_store %arg4[%c0_6, %c0_7], %8 {strides = array<i32>} : memref<512x128xbf16, #tpu.memory_space<vmem>>, vector<512x128xbf16>,
    return
  }
  func.func @transform_0(%arg0: i32) -> (i32, i32) {
    %c0_i32 = arith.constant 0 : i32
    %c0_i32_0 = arith.constant 0 : i32
    return %arg0, %c0_i32 : i32, i32
  }
  func.func @transform_1(%arg0: i32) -> (i32, i32) {
    %c0_i32 = arith.constant 0 : i32
    %c0_i32_0 = arith.constant 0 : i32
    %c0_i32_1 = arith.constant 0 : i32
    return %c0_i32, %c0_i32_0 : i32, i32
  }
  func.func @transform_2(%arg0: i32) -> (i32, i32) {
    %c0_i32 = arith.constant 0 : i32
    %c0_i32_0 = arith.constant 0 : i32
    %c0_i32_1 = arith.constant 0 : i32
    return %c0_i32, %c0_i32_0 : i32, i32
  }
  func.func @transform_3(%arg0: i32) -> (i32, i32) {
    %c0_i32 = arith.constant 0 : i32
    %c0_i32_0 = arith.constant 0 : i32
    return %arg0, %c0_i32 : i32, i32
  }
}

module attributes {stable_mosaic.version = 11 : i64} {
  func.func @_gemm_bias_relu_kernel(%arg0: i32, %arg1: memref<80x512xbf16, #tpu.memory_space<vmem>>, %arg2: memref<512x128xbf16, #tpu.memory_space<vmem>>, %arg3: memref<1x128xf32, #tpu.memory_space<vmem>>, %arg4: memref<80x128xbf16, #tpu.memory_space<vmem>>) attributes {dimension_semantics = [#tpu.dimension_semantics<parallel>], iteration_bounds = array<i64: 2>, scalar_prefetch = 0 : i64, scratch_operands = 0 : i64, tpu.core_type = #tpu.core_type<tc>, window_params = [{transform_indices = @transform_0, window_bounds = array<i64: 80, 512>}, {pipeline_mode = #tpu.pipeline_mode<synchronous>, transform_indices = @transform_1, window_bounds = array<i64: 512, 128>}, {pipeline_mode = #tpu.pipeline_mode<synchronous>, transform_indices = @transform_2, window_bounds = array<i64: 1, 128>}, {transform_indices = @transform_3, window_bounds = array<i64: 80, 128>}]} {
    %c0 = arith.constant 0 : index
    %c0_0 = arith.constant 0 : index
    %0 = vector.load %arg1[%c0, %c0_0] : memref<80x512xbf16, #tpu.memory_space<vmem>>, vector<80x512xbf16>
    %c0_1 = arith.constant 0 : index
    %c0_2 = arith.constant 0 : index
    %1 = vector.load %arg2[%c0_1, %c0_2] : memref<512x128xbf16, #tpu.memory_space<vmem>>, vector<512x128xbf16>
    %cst = arith.constant dense<0.000000e+00> : vector<80x128xf32>
    %2 = tpu.matmul %0, %1, %cst {dimension_numbers = #tpu.dot_dimension_numbers<[1], [0], [0], [1], [0, 0, 1, 1], [], []>} : vector<80x512xbf16>, vector<512x128xbf16>, vector<80x128xf32> -> vector<80x128xf32>
    %c0_3 = arith.constant 0 : index
    %c0_4 = arith.constant 0 : index
    %3 = vector.load %arg3[%c0_3, %c0_4] : memref<1x128xf32, #tpu.memory_space<vmem>>, vector<1x128xf32>
    %4 = vector.broadcast %3 : vector<1x128xf32> to vector<80x128xf32>
    %5 = arith.addf %2, %4 : vector<80x128xf32>
    %cst_5 = arith.constant 0.000000e+00 : f32
    %6 = vector.broadcast %cst_5 : f32 to vector<80x128xf32>
    %7 = arith.maximumf %5, %6 : vector<80x128xf32>
    %8 = arith.truncf %7 : vector<80x128xf32> to vector<80x128xbf16>
    %c0_6 = arith.constant 0 : index
    %c0_7 = arith.constant 0 : index
    %9 = vector.load %arg4[%c0_6, %c0_7] : memref<80x128xbf16, #tpu.memory_space<vmem>>, vector<80x128xbf16>
    tpu.vector_store %arg4[%c0_6, %c0_7], %8 {strides = array<i32>} : memref<80x128xbf16, #tpu.memory_space<vmem>>, vector<80x128xbf16>,
    return
  }
  func.func @transform_0(%arg0: i32) -> (i32, i32) {
    %c0_i32 = arith.constant 0 : i32
    %c0_i32_0 = arith.constant 0 : i32
    return %arg0, %c0_i32 : i32, i32
  }
  func.func @transform_1(%arg0: i32) -> (i32, i32) {
    %c0_i32 = arith.constant 0 : i32
    %c0_i32_0 = arith.constant 0 : i32
    %c0_i32_1 = arith.constant 0 : i32
    return %c0_i32, %c0_i32_0 : i32, i32
  }
  func.func @transform_2(%arg0: i32) -> (i32, i32) {
    %c0_i32 = arith.constant 0 : i32
    %c0_i32_0 = arith.constant 0 : i32
    %c0_i32_1 = arith.constant 0 : i32
    return %c0_i32, %c0_i32_0 : i32, i32
  }
  func.func @transform_3(%arg0: i32) -> (i32, i32) {
    %c0_i32 = arith.constant 0 : i32
    %c0_i32_0 = arith.constant 0 : i32
    return %arg0, %c0_i32 : i32, i32
  }
}

module attributes {stable_mosaic.version = 11 : i64} {
  func.func @_gemm_bias_relu_kernel(%arg0: i32, %arg1: memref<16x640xbf16, #tpu.memory_space<vmem>>, %arg2: memref<640x128xbf16, #tpu.memory_space<vmem>>, %arg3: memref<1x128xf32, #tpu.memory_space<vmem>>, %arg4: memref<16x128xbf16, #tpu.memory_space<vmem>>) attributes {dimension_semantics = [#tpu.dimension_semantics<parallel>], iteration_bounds = array<i64: 2>, scalar_prefetch = 0 : i64, scratch_operands = 0 : i64, tpu.core_type = #tpu.core_type<tc>, window_params = [{transform_indices = @transform_0, window_bounds = array<i64: 16, 640>}, {pipeline_mode = #tpu.pipeline_mode<synchronous>, transform_indices = @transform_1, window_bounds = array<i64: 640, 128>}, {pipeline_mode = #tpu.pipeline_mode<synchronous>, transform_indices = @transform_2, window_bounds = array<i64: 1, 128>}, {transform_indices = @transform_3, window_bounds = array<i64: 16, 128>}]} {
    %c0 = arith.constant 0 : index
    %c0_0 = arith.constant 0 : index
    %0 = vector.load %arg1[%c0, %c0_0] : memref<16x640xbf16, #tpu.memory_space<vmem>>, vector<16x640xbf16>
    %c0_1 = arith.constant 0 : index
    %c0_2 = arith.constant 0 : index
    %1 = vector.load %arg2[%c0_1, %c0_2] : memref<640x128xbf16, #tpu.memory_space<vmem>>, vector<640x128xbf16>
    %cst = arith.constant dense<0.000000e+00> : vector<16x128xf32>
    %2 = tpu.matmul %0, %1, %cst {dimension_numbers = #tpu.dot_dimension_numbers<[1], [0], [0], [1], [0, 0, 1, 1], [], []>} : vector<16x640xbf16>, vector<640x128xbf16>, vector<16x128xf32> -> vector<16x128xf32>
    %c0_3 = arith.constant 0 : index
    %c0_4 = arith.constant 0 : index
    %3 = vector.load %arg3[%c0_3, %c0_4] : memref<1x128xf32, #tpu.memory_space<vmem>>, vector<1x128xf32>
    %4 = vector.broadcast %3 : vector<1x128xf32> to vector<16x128xf32>
    %5 = arith.addf %2, %4 : vector<16x128xf32>
    %cst_5 = arith.constant 0.000000e+00 : f32
    %6 = vector.broadcast %cst_5 : f32 to vector<16x128xf32>
    %7 = arith.maximumf %5, %6 : vector<16x128xf32>
    %8 = arith.truncf %7 : vector<16x128xf32> to vector<16x128xbf16>
    %c0_6 = arith.constant 0 : index
    %c0_7 = arith.constant 0 : index
    %9 = vector.load %arg4[%c0_6, %c0_7] : memref<16x128xbf16, #tpu.memory_space<vmem>>, vector<16x128xbf16>
    tpu.vector_store %arg4[%c0_6, %c0_7], %8 {strides = array<i32>} : memref<16x128xbf16, #tpu.memory_space<vmem>>, vector<16x128xbf16>,
    return
  }
  func.func @transform_0(%arg0: i32) -> (i32, i32) {
    %c0_i32 = arith.constant 0 : i32
    %c0_i32_0 = arith.constant 0 : i32
    return %arg0, %c0_i32 : i32, i32
  }
  func.func @transform_1(%arg0: i32) -> (i32, i32) {
    %c0_i32 = arith.constant 0 : i32
    %c0_i32_0 = arith.constant 0 : i32
    %c0_i32_1 = arith.constant 0 : i32
    return %c0_i32, %c0_i32_0 : i32, i32
  }
  func.func @transform_2(%arg0: i32) -> (i32, i32) {
    %c0_i32 = arith.constant 0 : i32
    %c0_i32_0 = arith.constant 0 : i32
    %c0_i32_1 = arith.constant 0 : i32
    return %c0_i32, %c0_i32_0 : i32, i32
  }
  func.func @transform_3(%arg0: i32) -> (i32, i32) {
    %c0_i32 = arith.constant 0 : i32
    %c0_i32_0 = arith.constant 0 : i32
    return %arg0, %c0_i32 : i32, i32
  }
}

</mosaic_0001>

<llo_original>
// kernel: encoder_forward.3
$region0: #{encoder_forward.3}
  #allocation0 [shape = 'u32[]', space=smem, size = 0x4, offset = 0x4, fixed_abs, tag = 'smem constant byte address 0x4 - core index']
  #allocation1 [shape = 'u32[72,128]{1,0:T(1,128)}', space=vmem, size = 0x9000, scoped, tag = 'internal scratch']
  %s0 = inlined_call_operand.vmem [shape: bf16[1024,256], index: 0, kind: input, shape index: {}]
  %s1 = inlined_call_operand.vmem [shape: bf16[256,128], index: 1, kind: input, shape index: {}]
  %s2 = inlined_call_operand.vmem [shape: f32[1,128], index: 2, kind: input, shape index: {}]
  %s3 = inlined_call_operand.vmem [shape: bf16[1024,128], index: 3, kind: output, shape index: {}]
  %s4 = sld [smem:[#allocation0]]
  $region45: #{encoder_forward.3} parent=0
    _
  %s6 = ssub.s32 1, %s4
  %s7 = scalar_select 0, %s6, %s4
  loop: start=0, step=1, limit=4
  $region2: #{encoder_forward.3} parent=0 // loop_pre_header
    _
  $region3: #{encoder_forward.3} parent=0 // loop_header
    %s9 = sphi 0, %s13
    %p10 = scmp.ge.s32.totalorder %s9, 4
    %s19 = sphi 0, %s21
    %s22 = sphi 0, %s19
    %s23 = sphi 0, %s22
    %s39 = sphi 0, %s23
    %s43 = sphi 0, %s43
    %s45 = sphi 0, %s43
    %s46 = sphi 0, %s45
    %s60 = sphi 0, %s46
    %s64 = sphi 0, %s64
    %s66 = sphi 0, %s64
    %s67 = sphi 0, %s66
    %s81 = sphi 0, %s67
    %s87 = sphi 0, %s89
    %s90 = sphi 0, %s87
    %s91 = sphi 0, %s90
    %s107 = sphi 0, %s91
  $region4: #{encoder_forward.3} parent=0 // loop_header_branch
    %12 = sbr.rel (%p10) target = $region8
  $region5: #{encoder_forward.3} parent=0 // loop_body
    %s14 = ssub.s32 %s9, 1
    %s15 = ssub.s32 %s9, 2
    %s16 = sadd.s32 %s9, 1
    %s17 = ssub.s32 %s9, %s16
    %p18 = scmp.eq.s32.totalorder %s17, 0
    %s20 = sadd.s32 %s19, 1
    %s21 = scalar_select %p18, %s19, %s20
    %p24 = pneg %p18
    %p25 = scmp.eq.s32.totalorder %s9, 1
    %p26 = por %p24, %p25
    %p27 = scmp.ne.s32.totalorder %s19, %s22
    %p28 = scmp.eq.s32.totalorder %s9, 0
    %p29 = por %p27, %p28
    %p30 = scmp.ne.s32.totalorder %s19, %s22
    %p31 = scmp.eq.s32.totalorder %s14, 1
    %p32 = por %p30, %p31
    %p33 = scmp.ne.s32.totalorder %s22, %s23
    %p34 = scmp.eq.s32.totalorder %s14, 0
    %p35 = por %p33, %p34
    %p36 = scmp.ne.s32.totalorder %s22, %s23
    %p37 = scmp.eq.s32.totalorder %s15, 1
    %p38 = por %p36, %p37
    %p40 = scmp.ne.s32.totalorder %s23, %s39
    %p41 = scmp.eq.s32.totalorder %s15, 0
    %p42 = por %p40, %p41
    %s44 = sadd.s32 %s43, 1
    %p47 = scmp.eq.s32.totalorder %s9, 1
    %p48 = scmp.ne.s32.totalorder %s43, %s45
    %p49 = scmp.eq.s32.totalorder %s9, 0
    %p50 = por %p48, %p49
    %p51 = scmp.ne.s32.totalorder %s43, %s45
    %p52 = scmp.eq.s32.totalorder %s14, 1
    %p53 = por %p51, %p52
    %p54 = scmp.ne.s32.totalorder %s45, %s46
    %p55 = scmp.eq.s32.totalorder %s14, 0
    %p56 = por %p54, %p55
    %p57 = scmp.ne.s32.totalorder %s45, %s46
    %p58 = scmp.eq.s32.totalorder %s15, 1
    %p59 = por %p57, %p58
    %p61 = scmp.ne.s32.totalorder %s46, %s60
    %p62 = scmp.eq.s32.totalorder %s15, 0
    %p63 = por %p61, %p62
    %s65 = sadd.s32 %s64, 1
    %p68 = scmp.eq.s32.totalorder %s9, 1
    %p69 = scmp.ne.s32.totalorder %s64, %s66
    %p70 = scmp.eq.s32.totalorder %s9, 0
    %p71 = por %p69, %p70
    %p72 = scmp.ne.s32.totalorder %s64, %s66
    %p73 = scmp.eq.s32.totalorder %s14, 1
    %p74 = por %p72, %p73
    %p75 = scmp.ne.s32.totalorder %s66, %s67
    %p76 = scmp.eq.s32.totalorder %s14, 0
    %p77 = por %p75, %p76
    %p78 = scmp.ne.s32.totalorder %s66, %s67
    %p79 = scmp.eq.s32.totalorder %s15, 1
    %p80 = por %p78, %p79
    %p82 = scmp.ne.s32.totalorder %s67, %s81
    %p83 = scmp.eq.s32.totalorder %s15, 0
    %p84 = por %p82, %p83
    %s85 = ssub.s32 %s9, %s16
    %p86 = scmp.eq.s32.totalorder %s85, 0
    %s88 = sadd.s32 %s87, 1
    %s89 = scalar_select %p86, %s87, %s88
    %p92 = pneg %p86
    %p93 = scmp.eq.s32.totalorder %s9, 1
    %p94 = por %p92, %p93
    %p95 = scmp.ne.s32.totalorder %s87, %s90
    %p96 = scmp.eq.s32.totalorder %s9, 0
    %p97 = por %p95, %p96
    %p98 = scmp.ne.s32.totalorder %s87, %s90
    %p99 = scmp.eq.s32.totalorder %s14, 1
    %p100 = por %p98, %p99
    %p101 = scmp.ne.s32.totalorder %s90, %s91
    %p102 = scmp.eq.s32.totalorder %s14, 0
    %p103 = por %p101, %p102
    %p104 = scmp.ne.s32.totalorder %s90, %s91
    %p105 = scmp.eq.s32.totalorder %s15, 1
    %p106 = por %p104, %p105
    %p108 = scmp.ne.s32.totalorder %s91, %s107
    %p109 = scmp.eq.s32.totalorder %s15, 0
    %p110 = por %p108, %p109
    %p111 = scmp.le.s32.totalorder 1, %s9
    %p112 = scmp.lt.s32.totalorder %s9, 3
    %p113 = pnand %p111, %p112
    %p114 = pneg %p113
    // Predicated region
    $region9: #{encoder_forward.3} parent=5 // pred_check
      _
    $region10: #{encoder_forward.3} parent=5 // pred_check_branch
      %116 = sbr.rel (%p113) target = $region12
    $region11: #{encoder_forward.3} parent=5 // pred_region
      %s117 = ssub.s32 %s9, 1
      // Predicated region
      $region13: #{encoder_forward.3} parent=11 // pred_check
        %p118 = pneg %p56
      $region14: #{encoder_forward.3} parent=11 // pred_check_branch
        %120 = sbr.rel (%p118) target = $region16
      $region15: #{encoder_forward.3} parent=11 // pred_region
        _
      $region16: #{encoder_forward.3} parent=11 // pred_fallthru
        _
      // Predicated region
      $region17: #{encoder_forward.3} parent=11 // pred_check
        %p121 = pneg %p77
      $region18: #{encoder_forward.3} parent=11 // pred_check_branch
        %123 = sbr.rel (%p121) target = $region20
      $region19: #{encoder_forward.3} parent=11 // pred_region
        _
      $region20: #{encoder_forward.3} parent=11 // pred_fallthru
        _
    $region12: #{encoder_forward.3} parent=5 // pred_fallthru
      _
    %p124 = scmp.lt.s32.totalorder %s9, 2
    // Predicated region
    $region21: #{encoder_forward.3} parent=5 // pred_check
      %p125 = pneg %p124
    $region22: #{encoder_forward.3} parent=5 // pred_check_branch
      %127 = sbr.rel (%p125) target = $region24
    $region23: #{encoder_forward.3} parent=5 // pred_region
      // Predicated region
      $region25: #{encoder_forward.3} parent=23 // pred_check
        %p128 = pneg %p29
      $region26: #{encoder_forward.3} parent=23 // pred_check_branch
        %130 = sbr.rel (%p128) target = $region28
      $region27: #{encoder_forward.3} parent=23 // pred_region
        %s131 = smul.u32 64, %s9
        %p132 = scmp.lt.s32.totalorder %s131, 127
        %s133 = scalar_select %p132, %s131, 127
        %s134 = smul.addr %s133, 2
        %s135 = smul.addr %s134, 4
        %s136 = scalar_lea.vmem %s0, %s135
        %s137 = smul.u32 64, %s9
      $region28: #{encoder_forward.3} parent=23 // pred_fallthru
        _
    $region24: #{encoder_forward.3} parent=5 // pred_fallthru
      _
    %p138 = scmp.le.s32.totalorder 1, %s9
    %p139 = scmp.lt.s32.totalorder %s9, 3
    %p140 = pnand %p138, %p139
    %p141 = pneg %p140
    // Predicated region
    $region29: #{encoder_forward.3} parent=5 // pred_check
      _
    $region30: #{encoder_forward.3} parent=5 // pred_check_branch
      %143 = sbr.rel (%p140) target = $region32
    $region31: #{encoder_forward.3} parent=5 // pred_region
      %s144 = ssub.s32 %s9, 1
      %s145 = smul.u32 64, %s14
      %p146 = scmp.lt.s32.totalorder %s145, 127
      %s147 = scalar_select %p146, %s145, 127
      %s148 = smul.addr %s147, 2
      %s149 = smul.addr %s148, 4
      %s150 = scalar_lea.vmem %s0, %s149
      %p151 = pneg %p35
      %p152 = pneg %p32
      %p153 = pneg %p56
      %p154 = pneg %p53
      %p155 = pneg %p77
      %p156 = pneg %p74
      %p157 = pneg %p103
      %p158 = pneg %p100
      %s159 = smul.u32 64, %s14
      %p160 = scmp.lt.s32.totalorder %s159, 127
      %s161 = scalar_select %p160, %s159, 127
      %s162 = smul.addr %s161, 4
      %s163 = scalar_lea.vmem %s3, %s162
      %s164 = smul.u32 64, %s14
      %p165 = scmp.lt.s32.totalorder %s164, 127
      %s166 = scalar_select %p165, %s164, 127
      %s167 = smul.addr %s166, 2
      %s168 = smul.addr %s167, 4
      %s169 = scalar_lea.vmem %s0, %s168
      %s170 = smul.u32 64, %s14
      %s171 = smul.u32 64, %s14
      %p172 = scmp.lt.s32.totalorder %s171, 127
      %s173 = scalar_select %p172, %s171, 127
      %s174 = smul.addr %s173, 4
      %s175 = scalar_lea.vmem %s3, %s174
      %s176 = smul.u32 64, %s14
      %v177 = vld [vmem:[%s169] sm:$0xff]
      %v178 = vld [vmem:[%s169 + $0x8] sm:$0xff]
      %v179 = vld [vmem:[%s169 + $0x10] sm:$0xff]
      %v180 = vld [vmem:[%s169 + $0x18] sm:$0xff]
      %v181 = vld [vmem:[%s169 + $0x20] sm:$0xff]
      %v182 = vld [vmem:[%s169 + $0x28] sm:$0xff]
      %v183 = vld [vmem:[%s169 + $0x30] sm:$0xff]
      %v184 = vld [vmem:[%s169 + $0x38] sm:$0xff]
      %v185 = vld [vmem:[%s169 + $0x40] sm:$0xff]
      %v186 = vld [vmem:[%s169 + $0x48] sm:$0xff]
      %v187 = vld [vmem:[%s169 + $0x50] sm:$0xff]
      %v188 = vld [vmem:[%s169 + $0x58] sm:$0xff]
      %v189 = vld [vmem:[%s169 + $0x60] sm:$0xff]
      %v190 = vld [vmem:[%s169 + $0x68] sm:$0xff]
      %v191 = vld [vmem:[%s169 + $0x70] sm:$0xff]
      %v192 = vld [vmem:[%s169 + $0x78] sm:$0xff]
      %v193 = vld [vmem:[%s169 + $0x80] sm:$0xff]
      %v194 = vld [vmem:[%s169 + $0x88] sm:$0xff]
      %v195 = vld [vmem:[%s169 + $0x90] sm:$0xff]
      %v196 = vld [vmem:[%s169 + $0x98] sm:$0xff]
      %v197 = vld [vmem:[%s169 + $0xa0] sm:$0xff]
      %v198 = vld [vmem:[%s169 + $0xa8] sm:$0xff]
      %v199 = vld [vmem:[%s169 + $0xb0] sm:$0xff]
      %v200 = vld [vmem:[%s169 + $0xb8] sm:$0xff]
      %v201 = vld [vmem:[%s169 + $0xc0] sm:$0xff]
      %v202 = vld [vmem:[%s169 + $0xc8] sm:$0xff]
      %v203 = vld [vmem:[%s169 + $0xd0] sm:$0xff]
      %v204 = vld [vmem:[%s169 + $0xd8] sm:$0xff]
      %v205 = vld [vmem:[%s169 + $0xe0] sm:$0xff]
      %v206 = vld [vmem:[%s169 + $0xe8] sm:$0xff]
      %v207 = vld [vmem:[%s169 + $0xf0] sm:$0xff]
      %v208 = vld [vmem:[%s169 + $0xf8] sm:$0xff]
      %v209 = vld [vmem:[%s169 + $0x100] sm:$0xff]
      %v210 = vld [vmem:[%s169 + $0x108] sm:$0xff]
      %v211 = vld [vmem:[%s169 + $0x110] sm:$0xff]
      %v212 = vld [vmem:[%s169 + $0x118] sm:$0xff]
      %v213 = vld [vmem:[%s169 + $0x120] sm:$0xff]
      %v214 = vld [vmem:[%s169 + $0x128] sm:$0xff]
      %v215 = vld [vmem:[%s169 + $0x130] sm:$0xff]
      %v216 = vld [vmem:[%s169 + $0x138] sm:$0xff]
      %v217 = vld [vmem:[%s169 + $0x140] sm:$0xff]
      %v218 = vld [vmem:[%s169 + $0x148] sm:$0xff]
      %v219 = vld [vmem:[%s169 + $0x150] sm:$0xff]
      %v220 = vld [vmem:[%s169 + $0x158] sm:$0xff]
      %v221 = vld [vmem:[%s169 + $0x160] sm:$0xff]
      %v222 = vld [vmem:[%s169 + $0x168] sm:$0xff]
      %v223 = vld [vmem:[%s169 + $0x170] sm:$0xff]
      %v224 = vld [vmem:[%s169 + $0x178] sm:$0xff]
      %v225 = vld [vmem:[%s169 + $0x180] sm:$0xff]
      %v226 = vld [vmem:[%s169 + $0x188] sm:$0xff]
      %v227 = vld [vmem:[%s169 + $0x190] sm:$0xff]
      %v228 = vld [vmem:[%s169 + $0x198] sm:$0xff]
      %v229 = vld [vmem:[%s169 + $0x1a0] sm:$0xff]
      %v230 = vld [vmem:[%s169 + $0x1a8] sm:$0xff]
      %v231 = vld [vmem:[%s169 + $0x1b0] sm:$0xff]
      %v232 = vld [vmem:[%s169 + $0x1b8] sm:$0xff]
      %v233 = vld [vmem:[%s169 + $0x1c0] sm:$0xff]
      %v234 = vld [vmem:[%s169 + $0x1c8] sm:$0xff]
      %v235 = vld [vmem:[%s169 + $0x1d0] sm:$0xff]
      %v236 = vld [vmem:[%s169 + $0x1d8] sm:$0xff]
      %v237 = vld [vmem:[%s169 + $0x1e0] sm:$0xff]
      %v238 = vld [vmem:[%s169 + $0x1e8] sm:$0xff]
      %v239 = vld [vmem:[%s169 + $0x1f0] sm:$0xff]
      %v240 = vld [vmem:[%s169 + $0x1f8] sm:$0xff]
      %v241 = vld [vmem:[%s1] sm:$0xf]
      %v242 = vld [vmem:[%s1 + $0x4] sm:$0xf]
      %v243 = vld [vmem:[%s1 + $0x8] sm:$0xf]
      %v244 = vld [vmem:[%s1 + $0xc] sm:$0xf]
      %v245 = vld [vmem:[%s1 + $0x10] sm:$0xf]
      %v246 = vld [vmem:[%s1 + $0x14] sm:$0xf]
      %v247 = vld [vmem:[%s1 + $0x18] sm:$0xf]
      %v248 = vld [vmem:[%s1 + $0x1c] sm:$0xf]
      %v249 = vld [vmem:[%s1 + $0x20] sm:$0xf]
      %v250 = vld [vmem:[%s1 + $0x24] sm:$0xf]
      %v251 = vld [vmem:[%s1 + $0x28] sm:$0xf]
      %v252 = vld [vmem:[%s1 + $0x2c] sm:$0xf]
      %v253 = vld [vmem:[%s1 + $0x30] sm:$0xf]
      %v254 = vld [vmem:[%s1 + $0x34] sm:$0xf]
      %v255 = vld [vmem:[%s1 + $0x38] sm:$0xf]
      %v256 = vld [vmem:[%s1 + $0x3c] sm:$0xf]
      %v257 = vld [vmem:[%s1 + $0x40] sm:$0xf]
      %v258 = vld [vmem:[%s1 + $0x44] sm:$0xf]
      %v259 = vld [vmem:[%s1 + $0x48] sm:$0xf]
      %v260 = vld [vmem:[%s1 + $0x4c] sm:$0xf]
      %v261 = vld [vmem:[%s1 + $0x50] sm:$0xf]
      %v262 = vld [vmem:[%s1 + $0x54] sm:$0xf]
      %v263 = vld [vmem:[%s1 + $0x58] sm:$0xf]
      %v264 = vld [vmem:[%s1 + $0x5c] sm:$0xf]
      %v265 = vld [vmem:[%s1 + $0x60] sm:$0xf]
      %v266 = vld [vmem:[%s1 + $0x64] sm:$0xf]
      %v267 = vld [vmem:[%s1 + $0x68] sm:$0xf]
      %v268 = vld [vmem:[%s1 + $0x6c] sm:$0xf]
      %v269 = vld [vmem:[%s1 + $0x70] sm:$0xf]
      %v270 = vld [vmem:[%s1 + $0x74] sm:$0xf]
      %v271 = vld [vmem:[%s1 + $0x78] sm:$0xf]
      %v272 = vld [vmem:[%s1 + $0x7c] sm:$0xf]
      %v273 = vld [vmem:[%s2] sm:$0x1]
      %v275 = vperm.slane %v273, 0
      %v341 = vunpack.c.l.b16 %v177
      %v342 = vunpack.c.h.b16 %v177
      %v343 = vunpack.c.l.b16 %v178
      %v344 = vunpack.c.h.b16 %v178
      %v345 = vunpack.c.l.b16 %v179
      %v346 = vunpack.c.h.b16 %v179
      %v347 = vunpack.c.l.b16 %v180
      %v348 = vunpack.c.h.b16 %v180
      %v349 = vunpack.c.l.b16 %v181
      %v350 = vunpack.c.h.b16 %v181
      %v351 = vunpack.c.l.b16 %v182
      %v352 = vunpack.c.h.b16 %v182
      %v353 = vunpack.c.l.b16 %v183
      %v354 = vunpack.c.h.b16 %v183
      %v355 = vunpack.c.l.b16 %v184
      %v356 = vunpack.c.h.b16 %v184
      %v357 = vunpack.c.l.b16 %v185
      %v358 = vunpack.c.h.b16 %v185
      %v359 = vunpack.c.l.b16 %v186
      %v360 = vunpack.c.h.b16 %v186
      %v361 = vunpack.c.l.b16 %v187
      %v362 = vunpack.c.h.b16 %v187
      %v363 = vunpack.c.l.b16 %v188
      %v364 = vunpack.c.h.b16 %v188
      %v365 = vunpack.c.l.b16 %v189
      %v366 = vunpack.c.h.b16 %v189
      %v367 = vunpack.c.l.b16 %v190
      %v368 = vunpack.c.h.b16 %v190
      %v369 = vunpack.c.l.b16 %v191
      %v370 = vunpack.c.h.b16 %v191
      %v371 = vunpack.c.l.b16 %v192
      %v372 = vunpack.c.h.b16 %v192
      %v373 = vunpack.c.l.b16 %v193
      %v374 = vunpack.c.h.b16 %v193
      %v375 = vunpack.c.l.b16 %v194
      %v376 = vunpack.c.h.b16 %v194
      %v377 = vunpack.c.l.b16 %v195
      %v378 = vunpack.c.h.b16 %v195
      %v379 = vunpack.c.l.b16 %v196
      %v380 = vunpack.c.h.b16 %v196
      %v381 = vunpack.c.l.b16 %v197
      %v382 = vunpack.c.h.b16 %v197
      %v383 = vunpack.c.l.b16 %v198
      %v384 = vunpack.c.h.b16 %v198
      %v385 = vunpack.c.l.b16 %v199
      %v386 = vunpack.c.h.b16 %v199
      %v387 = vunpack.c.l.b16 %v200
      %v388 = vunpack.c.h.b16 %v200
      %v389 = vunpack.c.l.b16 %v201
      %v390 = vunpack.c.h.b16 %v201
      %v391 = vunpack.c.l.b16 %v202
      %v392 = vunpack.c.h.b16 %v202
      %v393 = vunpack.c.l.b16 %v203
      %v394 = vunpack.c.h.b16 %v203
      %v395 = vunpack.c.l.b16 %v204
      %v396 = vunpack.c.h.b16 %v204
      %v397 = vunpack.c.l.b16 %v205
      %v398 = vunpack.c.h.b16 %v205
      %v399 = vunpack.c.l.b16 %v206
      %v400 = vunpack.c.h.b16 %v206
      %v401 = vunpack.c.l.b16 %v207
      %v402 = vunpack.c.h.b16 %v207
      %v403 = vunpack.c.l.b16 %v208
      %v404 = vunpack.c.h.b16 %v208
      %v405 = vunpack.c.l.b16 %v209
      %v406 = vunpack.c.h.b16 %v209
      %v407 = vunpack.c.l.b16 %v210
      %v408 = vunpack.c.h.b16 %v210
      %v409 = vunpack.c.l.b16 %v211
      %v410 = vunpack.c.h.b16 %v211
      %v411 = vunpack.c.l.b16 %v212
      %v412 = vunpack.c.h.b16 %v212
      %v413 = vunpack.c.l.b16 %v213
      %v414 = vunpack.c.h.b16 %v213
      %v415 = vunpack.c.l.b16 %v214
      %v416 = vunpack.c.h.b16 %v214
      %v417 = vunpack.c.l.b16 %v215
      %v418 = vunpack.c.h.b16 %v215
      %v419 = vunpack.c.l.b16 %v216
      %v420 = vunpack.c.h.b16 %v216
      %v421 = vunpack.c.l.b16 %v217
      %v422 = vunpack.c.h.b16 %v217
      %v423 = vunpack.c.l.b16 %v218
      %v424 = vunpack.c.h.b16 %v218
      %v425 = vunpack.c.l.b16 %v219
      %v426 = vunpack.c.h.b16 %v219
      %v427 = vunpack.c.l.b16 %v220
      %v428 = vunpack.c.h.b16 %v220
      %v429 = vunpack.c.l.b16 %v221
      %v430 = vunpack.c.h.b16 %v221
      %v431 = vunpack.c.l.b16 %v222
      %v432 = vunpack.c.h.b16 %v222
      %v433 = vunpack.c.l.b16 %v223
      %v434 = vunpack.c.h.b16 %v223
      %v435 = vunpack.c.l.b16 %v224
      %v436 = vunpack.c.h.b16 %v224
      %v437 = vunpack.c.l.b16 %v225
      %v438 = vunpack.c.h.b16 %v225
      %v439 = vunpack.c.l.b16 %v226
      %v440 = vunpack.c.h.b16 %v226
      %v441 = vunpack.c.l.b16 %v227
      %v442 = vunpack.c.h.b16 %v227
      %v443 = vunpack.c.l.b16 %v228
      %v444 = vunpack.c.h.b16 %v228
      %v445 = vunpack.c.l.b16 %v229
      %v446 = vunpack.c.h.b16 %v229
      %v447 = vunpack.c.l.b16 %v230
      %v448 = vunpack.c.h.b16 %v230
      %v449 = vunpack.c.l.b16 %v231
      %v450 = vunpack.c.h.b16 %v231
      %v451 = vunpack.c.l.b16 %v232
      %v452 = vunpack.c.h.b16 %v232
      %v453 = vunpack.c.l.b16 %v233
      %v454 = vunpack.c.h.b16 %v233
      %v455 = vunpack.c.l.b16 %v234
      %v456 = vunpack.c.h.b16 %v234
      %v457 = vunpack.c.l.b16 %v235
      %v458 = vunpack.c.h.b16 %v235
      %v459 = vunpack.c.l.b16 %v236
      %v460 = vunpack.c.h.b16 %v236
      %v461 = vunpack.c.l.b16 %v237
      %v462 = vunpack.c.h.b16 %v237
      %v463 = vunpack.c.l.b16 %v238
      %v464 = vunpack.c.h.b16 %v238
      %v465 = vunpack.c.l.b16 %v239
      %v466 = vunpack.c.h.b16 %v239
      %v467 = vunpack.c.l.b16 %v240
      %v468 = vunpack.c.h.b16 %v240
      %v469 = vpack.c.b16 %v343, %v341
      %v470 = vpack.c.b16 %v344, %v342
      %v471 = vpack.c.b16 %v347, %v345
      %v472 = vpack.c.b16 %v348, %v346
      %v473 = vpack.c.b16 %v351, %v349
      %v474 = vpack.c.b16 %v352, %v350
      %v475 = vpack.c.b16 %v355, %v353
      %v476 = vpack.c.b16 %v356, %v354
      %v477 = vpack.c.b16 %v359, %v357
      %v478 = vpack.c.b16 %v360, %v358
      %v479 = vpack.c.b16 %v363, %v361
      %v480 = vpack.c.b16 %v364, %v362
      %v481 = vpack.c.b16 %v367, %v365
      %v482 = vpack.c.b16 %v368, %v366
      %v483 = vpack.c.b16 %v371, %v369
      %v484 = vpack.c.b16 %v372, %v370
      %v485 = vpack.c.b16 %v375, %v373
      %v486 = vpack.c.b16 %v376, %v374
      %v487 = vpack.c.b16 %v379, %v377
      %v488 = vpack.c.b16 %v380, %v378
      %v489 = vpack.c.b16 %v383, %v381
      %v490 = vpack.c.b16 %v384, %v382
      %v491 = vpack.c.b16 %v387, %v385
      %v492 = vpack.c.b16 %v388, %v386
      %v493 = vpack.c.b16 %v391, %v389
      %v494 = vpack.c.b16 %v392, %v390
      %v495 = vpack.c.b16 %v395, %v393
      %v496 = vpack.c.b16 %v396, %v394
      %v497 = vpack.c.b16 %v399, %v397
      %v498 = vpack.c.b16 %v400, %v398
      %v499 = vpack.c.b16 %v403, %v401
      %v500 = vpack.c.b16 %v404, %v402
      %v501 = vpack.c.b16 %v407, %v405
      %v502 = vpack.c.b16 %v408, %v406
      %v503 = vpack.c.b16 %v411, %v409
      %v504 = vpack.c.b16 %v412, %v410
      %v505 = vpack.c.b16 %v415, %v413
      %v506 = vpack.c.b16 %v416, %v414
      %v507 = vpack.c.b16 %v419, %v417
      %v508 = vpack.c.b16 %v420, %v418
      %v509 = vpack.c.b16 %v423, %v421
      %v510 = vpack.c.b16 %v424, %v422
      %v511 = vpack.c.b16 %v427, %v425
      %v512 = vpack.c.b16 %v428, %v426
      %v513 = vpack.c.b16 %v431, %v429
      %v514 = vpack.c.b16 %v432, %v430
      %v515 = vpack.c.b16 %v435, %v433
      %v516 = vpack.c.b16 %v436, %v434
      %v517 = vpack.c.b16 %v439, %v437
      %v518 = vpack.c.b16 %v440, %v438
      %v519 = vpack.c.b16 %v443, %v441
      %v520 = vpack.c.b16 %v444, %v442
      %v521 = vpack.c.b16 %v447, %v445
      %v522 = vpack.c.b16 %v448, %v446
      %v523 = vpack.c.b16 %v451, %v449
      %v524 = vpack.c.b16 %v452, %v450
      %v525 = vpack.c.b16 %v455, %v453
      %v526 = vpack.c.b16 %v456, %v454
      %v527 = vpack.c.b16 %v459, %v457
      %v528 = vpack.c.b16 %v460, %v458
      %v529 = vpack.c.b16 %v463, %v461
      %v530 = vpack.c.b16 %v464, %v462
      %v531 = vpack.c.b16 %v467, %v465
      %v532 = vpack.c.b16 %v468, %v466
      %v629 = vunpack.c.l.b16 %v241
      %v630 = vunpack.c.l.b16 %v242
      %v631 = vunpack.c.l.b16 %v243
      %v632 = vunpack.c.l.b16 %v244
      %v633 = vunpack.c.l.b16 %v245
      %v634 = vunpack.c.l.b16 %v246
      %v635 = vunpack.c.l.b16 %v247
      %v636 = vunpack.c.l.b16 %v248
      %v637 = vunpack.c.l.b16 %v249
      %v638 = vunpack.c.l.b16 %v250
      %v639 = vunpack.c.l.b16 %v251
      %v640 = vunpack.c.l.b16 %v252
      %v641 = vunpack.c.l.b16 %v253
      %v642 = vunpack.c.l.b16 %v254
      %v643 = vunpack.c.l.b16 %v255
      %v644 = vunpack.c.l.b16 %v256
      %v645 = vunpack.c.l.b16 %v257
      %v646 = vunpack.c.l.b16 %v258
      %v647 = vunpack.c.l.b16 %v259
      %v648 = vunpack.c.l.b16 %v260
      %v649 = vunpack.c.l.b16 %v261
      %v650 = vunpack.c.l.b16 %v262
      %v651 = vunpack.c.l.b16 %v263
      %v652 = vunpack.c.l.b16 %v264
      %v653 = vunpack.c.l.b16 %v265
      %v654 = vunpack.c.l.b16 %v266
      %v655 = vunpack.c.l.b16 %v267
      %v656 = vunpack.c.l.b16 %v268
      %v657 = vunpack.c.l.b16 %v269
      %v658 = vunpack.c.l.b16 %v270
      %v659 = vunpack.c.l.b16 %v271
      %v660 = vunpack.c.l.b16 %v272
      %v661 = vpack.c.b16 %v630, %v629
      %v662 = vpack.c.b16 %v632, %v631
      %v663 = vpack.c.b16 %v634, %v633
      %v664 = vpack.c.b16 %v636, %v635
      %v665 = vpack.c.b16 %v638, %v637
      %v666 = vpack.c.b16 %v640, %v639
      %v667 = vpack.c.b16 %v642, %v641
      %v668 = vpack.c.b16 %v644, %v643
      %v669 = vpack.c.b16 %v646, %v645
      %v670 = vpack.c.b16 %v648, %v647
      %v671 = vpack.c.b16 %v650, %v649
      %v672 = vpack.c.b16 %v652, %v651
      %v673 = vpack.c.b16 %v654, %v653
      %v674 = vpack.c.b16 %v656, %v655
      %v675 = vpack.c.b16 %v658, %v657
      %v676 = vpack.c.b16 %v660, %v659
      %693 = vmatpush.bf16.msra.mxu0 %v668
      %694 = vmatpush.bf16.msra.mxu0 %v667
      %695 = vmatpush.bf16.msra.mxu0 %v666
      %696 = vmatpush.bf16.msra.mxu0 %v665
      %697 = vmatpush.bf16.msra.mxu0 %v664
      %698 = vmatpush.bf16.msra.mxu0 %v663
      %699 = vmatpush.bf16.msra.mxu0 %v662
      %700 = vmatpush.bf16.msra.mxu0 %v661
      %701 = vmatmul.bf16.gmra.mxu0 %v469
      %v702 = vpop.f32.mrf.mxu0
      %v703 = vadd.f32 %v275, %v702
      %v704 = vpop.f32.mrf.mxu0
      %v705 = vadd.f32 %v275, %v704
      %706 = vmatmul.bf16.gmra.mxu0 %v471
      %v707 = vpop.f32.mrf.mxu0
      %v708 = vadd.f32 %v275, %v707
      %v709 = vpop.f32.mrf.mxu0
      %v710 = vadd.f32 %v275, %v709
      %711 = vmatmul.bf16.gmra.mxu0 %v473
      %v712 = vpop.f32.mrf.mxu0
      %v713 = vadd.f32 %v275, %v712
      %v714 = vpop.f32.mrf.mxu0
      %v715 = vadd.f32 %v275, %v714
      %716 = vmatmul.bf16.gmra.mxu0 %v475
      %v717 = vpop.f32.mrf.mxu0
      %v718 = vadd.f32 %v275, %v717
      %v719 = vpop.f32.mrf.mxu0
      %v720 = vadd.f32 %v275, %v719
      %721 = vmatmul.bf16.gmra.mxu0 %v477
      %v722 = vpop.f32.mrf.mxu0
      %v723 = vadd.f32 %v275, %v722
      %v724 = vpop.f32.mrf.mxu0
      %v725 = vadd.f32 %v275, %v724
      %726 = vmatmul.bf16.gmra.mxu0 %v479
      %v727 = vpop.f32.mrf.mxu0
      %v728 = vadd.f32 %v275, %v727
      %v729 = vpop.f32.mrf.mxu0
      %v730 = vadd.f32 %v275, %v729
      %731 = vmatmul.bf16.gmra.mxu0 %v481
      %v732 = vpop.f32.mrf.mxu0
      %v733 = vadd.f32 %v275, %v732
      %v734 = vpop.f32.mrf.mxu0
      %v735 = vadd.f32 %v275, %v734
      %736 = vmatmul.bf16.gmra.mxu0 %v483
      %v737 = vpop.f32.mrf.mxu0
      %v738 = vadd.f32 %v275, %v737
      %v739 = vpop.f32.mrf.mxu0
      %v740 = vadd.f32 %v275, %v739
      %741 = vmatmul.bf16.gmra.mxu0 %v485
      %v742 = vpop.f32.mrf.mxu0
      %v743 = vadd.f32 %v275, %v742
      %v744 = vpop.f32.mrf.mxu0
      %v745 = vadd.f32 %v275, %v744
      %746 = vmatmul.bf16.gmra.mxu0 %v487
      %v747 = vpop.f32.mrf.mxu0
      %v748 = vadd.f32 %v275, %v747
      %v749 = vpop.f32.mrf.mxu0
      %v750 = vadd.f32 %v275, %v749
      %751 = vmatmul.bf16.gmra.mxu0 %v489
      %v752 = vpop.f32.mrf.mxu0
      %v753 = vadd.f32 %v275, %v752
      %v754 = vpop.f32.mrf.mxu0
      %v755 = vadd.f32 %v275, %v754
      %756 = vmatmul.bf16.gmra.mxu0 %v491
      %v757 = vpop.f32.mrf.mxu0
      %v758 = vadd.f32 %v275, %v757
      %v759 = vpop.f32.mrf.mxu0
      %v760 = vadd.f32 %v275, %v759
      %761 = vmatmul.bf16.gmra.mxu0 %v493
      %v762 = vpop.f32.mrf.mxu0
      %v763 = vadd.f32 %v275, %v762
      %v764 = vpop.f32.mrf.mxu0
      %v765 = vadd.f32 %v275, %v764
      %766 = vmatmul.bf16.gmra.mxu0 %v495
      %v767 = vpop.f32.mrf.mxu0
      %v768 = vadd.f32 %v275, %v767
      %v769 = vpop.f32.mrf.mxu0
      %v770 = vadd.f32 %v275, %v769
      %771 = vmatmul.bf16.gmra.mxu0 %v497
      %v772 = vpop.f32.mrf.mxu0
      %v773 = vadd.f32 %v275, %v772
      %v774 = vpop.f32.mrf.mxu0
      %v775 = vadd.f32 %v275, %v774
      %776 = vmatmul.bf16.gmra.mxu0 %v499
      %v777 = vpop.f32.mrf.mxu0
      %v778 = vadd.f32 %v275, %v777
      %v779 = vpop.f32.mrf.mxu0
      %v780 = vadd.f32 %v275, %v779
      %781 = vmatmul.bf16.gmra.mxu0 %v501
      %v782 = vpop.f32.mrf.mxu0
      %v783 = vadd.f32 %v275, %v782
      %v784 = vpop.f32.mrf.mxu0
      %v785 = vadd.f32 %v275, %v784
      %786 = vmatmul.bf16.gmra.mxu0 %v503
      %v787 = vpop.f32.mrf.mxu0
      %v788 = vadd.f32 %v275, %v787
      %v789 = vpop.f32.mrf.mxu0
      %v790 = vadd.f32 %v275, %v789
      %791 = vmatmul.bf16.gmra.mxu0 %v505
      %v792 = vpop.f32.mrf.mxu0
      %v793 = vadd.f32 %v275, %v792
      %v794 = vpop.f32.mrf.mxu0
      %v795 = vadd.f32 %v275, %v794
      %796 = vmatmul.bf16.gmra.mxu0 %v507
      %v797 = vpop.f32.mrf.mxu0
      %v798 = vadd.f32 %v275, %v797
      %v799 = vpop.f32.mrf.mxu0
      %v800 = vadd.f32 %v275, %v799
      %801 = vmatmul.bf16.gmra.mxu0 %v509
      %v802 = vpop.f32.mrf.mxu0
      %v803 = vadd.f32 %v275, %v802
      %v804 = vpop.f32.mrf.mxu0
      %v805 = vadd.f32 %v275, %v804
      %806 = vmatmul.bf16.gmra.mxu0 %v511
      %v807 = vpop.f32.mrf.mxu0
      %v808 = vadd.f32 %v275, %v807
      %v809 = vpop.f32.mrf.mxu0
      %v810 = vadd.f32 %v275, %v809
      %811 = vmatmul.bf16.gmra.mxu0 %v513
      %v812 = vpop.f32.mrf.mxu0
      %v813 = vadd.f32 %v275, %v812
      %v814 = vpop.f32.mrf.mxu0
      %v815 = vadd.f32 %v275, %v814
      %816 = vmatmul.bf16.gmra.mxu0 %v515
      %v817 = vpop.f32.mrf.mxu0
      %v818 = vadd.f32 %v275, %v817
      %v819 = vpop.f32.mrf.mxu0
      %v820 = vadd.f32 %v275, %v819
      %821 = vmatmul.bf16.gmra.mxu0 %v517
      %v822 = vpop.f32.mrf.mxu0
      %v823 = vadd.f32 %v275, %v822
      %v824 = vpop.f32.mrf.mxu0
      %v825 = vadd.f32 %v275, %v824
      %826 = vmatmul.bf16.gmra.mxu0 %v519
      %v827 = vpop.f32.mrf.mxu0
      %v828 = vadd.f32 %v275, %v827
      %v829 = vpop.f32.mrf.mxu0
      %v830 = vadd.f32 %v275, %v829
      %831 = vmatmul.bf16.gmra.mxu0 %v521
      %v832 = vpop.f32.mrf.mxu0
      %v833 = vadd.f32 %v275, %v832
      %v834 = vpop.f32.mrf.mxu0
      %v835 = vadd.f32 %v275, %v834
      %836 = vmatmul.bf16.gmra.mxu0 %v523
      %v837 = vpop.f32.mrf.mxu0
      %v838 = vadd.f32 %v275, %v837
      %v839 = vpop.f32.mrf.mxu0
      %v840 = vadd.f32 %v275, %v839
      %841 = vmatmul.bf16.gmra.mxu0 %v525
      %v842 = vpop.f32.mrf.mxu0
      %v843 = vadd.f32 %v275, %v842
      %v844 = vpop.f32.mrf.mxu0
      %v845 = vadd.f32 %v275, %v844
      %846 = vmatmul.bf16.gmra.mxu0 %v527
      %v847 = vpop.f32.mrf.mxu0
      %v848 = vadd.f32 %v275, %v847
      %v849 = vpop.f32.mrf.mxu0
      %v850 = vadd.f32 %v275, %v849
      %851 = vmatmul.bf16.gmra.mxu0 %v529
      %v852 = vpop.f32.mrf.mxu0
      %v853 = vadd.f32 %v275, %v852
      %v854 = vpop.f32.mrf.mxu0
      %v855 = vadd.f32 %v275, %v854
      %856 = vmatmul.bf16.gmra.mxu0 %v531
      %v857 = vpop.f32.mrf.mxu0
      %v858 = vadd.f32 %v275, %v857
      %v859 = vpop.f32.mrf.mxu0
      %v860 = vadd.f32 %v275, %v859
      %861 = vdwg.mxu0
      %862 = vmatpush.bf16.msra.mxu0 %v676
      %863 = vmatpush.bf16.msra.mxu0 %v675
      %864 = vmatpush.bf16.msra.mxu0 %v674
      %865 = vmatpush.bf16.msra.mxu0 %v673
      %866 = vmatpush.bf16.msra.mxu0 %v672
      %867 = vmatpush.bf16.msra.mxu0 %v671
      %868 = vmatpush.bf16.msra.mxu0 %v670
      %869 = vmatpush.bf16.msra.mxu0 %v669
      %870 = vmatmul.bf16.gmra.mxu0 %v470
      %v871 = vpop.f32.mrf.mxu0
      %v872 = vadd.f32 %v703, %v871
      %v873 = vpop.f32.mrf.mxu0
      %v874 = vadd.f32 %v705, %v873
      %875 = vmatmul.bf16.gmra.mxu0 %v472
      %v876 = vpop.f32.mrf.mxu0
      %v877 = vadd.f32 %v708, %v876
      %v878 = vpop.f32.mrf.mxu0
      %v879 = vadd.f32 %v710, %v878
      %880 = vmatmul.bf16.gmra.mxu0 %v474
      %v881 = vpop.f32.mrf.mxu0
      %v882 = vadd.f32 %v713, %v881
      %v883 = vpop.f32.mrf.mxu0
      %v884 = vadd.f32 %v715, %v883
      %885 = vmatmul.bf16.gmra.mxu0 %v476
      %v886 = vpop.f32.mrf.mxu0
      %v887 = vadd.f32 %v718, %v886
      %v888 = vpop.f32.mrf.mxu0
      %v889 = vadd.f32 %v720, %v888
      %890 = vmatmul.bf16.gmra.mxu0 %v478
      %v891 = vpop.f32.mrf.mxu0
      %v892 = vadd.f32 %v723, %v891
      %v893 = vpop.f32.mrf.mxu0
      %v894 = vadd.f32 %v725, %v893
      %895 = vmatmul.bf16.gmra.mxu0 %v480
      %v896 = vpop.f32.mrf.mxu0
      %v897 = vadd.f32 %v728, %v896
      %v898 = vpop.f32.mrf.mxu0
      %v899 = vadd.f32 %v730, %v898
      %900 = vmatmul.bf16.gmra.mxu0 %v482
      %v901 = vpop.f32.mrf.mxu0
      %v902 = vadd.f32 %v733, %v901
      %v903 = vpop.f32.mrf.mxu0
      %v904 = vadd.f32 %v735, %v903
      %905 = vmatmul.bf16.gmra.mxu0 %v484
      %v906 = vpop.f32.mrf.mxu0
      %v907 = vadd.f32 %v738, %v906
      %v908 = vpop.f32.mrf.mxu0
      %v909 = vadd.f32 %v740, %v908
      %910 = vmatmul.bf16.gmra.mxu0 %v486
      %v911 = vpop.f32.mrf.mxu0
      %v912 = vadd.f32 %v743, %v911
      %v913 = vpop.f32.mrf.mxu0
      %v914 = vadd.f32 %v745, %v913
      %915 = vmatmul.bf16.gmra.mxu0 %v488
      %v916 = vpop.f32.mrf.mxu0
      %v917 = vadd.f32 %v748, %v916
      %v918 = vpop.f32.mrf.mxu0
      %v919 = vadd.f32 %v750, %v918
      %920 = vmatmul.bf16.gmra.mxu0 %v490
      %v921 = vpop.f32.mrf.mxu0
      %v922 = vadd.f32 %v753, %v921
      %v923 = vpop.f32.mrf.mxu0
      %v924 = vadd.f32 %v755, %v923
      %925 = vmatmul.bf16.gmra.mxu0 %v492
      %v926 = vpop.f32.mrf.mxu0
      %v927 = vadd.f32 %v758, %v926
      %v928 = vpop.f32.mrf.mxu0
      %v929 = vadd.f32 %v760, %v928
      %930 = vmatmul.bf16.gmra.mxu0 %v494
      %v931 = vpop.f32.mrf.mxu0
      %v932 = vadd.f32 %v763, %v931
      %v933 = vpop.f32.mrf.mxu0
      %v934 = vadd.f32 %v765, %v933
      %935 = vmatmul.bf16.gmra.mxu0 %v496
      %v936 = vpop.f32.mrf.mxu0
      %v937 = vadd.f32 %v768, %v936
      %v938 = vpop.f32.mrf.mxu0
      %v939 = vadd.f32 %v770, %v938
      %940 = vmatmul.bf16.gmra.mxu0 %v498
      %v941 = vpop.f32.mrf.mxu0
      %v942 = vadd.f32 %v773, %v941
      %v943 = vpop.f32.mrf.mxu0
      %v944 = vadd.f32 %v775, %v943
      %945 = vmatmul.bf16.gmra.mxu0 %v500
      %v946 = vpop.f32.mrf.mxu0
      %v947 = vadd.f32 %v778, %v946
      %v948 = vpop.f32.mrf.mxu0
      %v949 = vadd.f32 %v780, %v948
      %950 = vmatmul.bf16.gmra.mxu0 %v502
      %v951 = vpop.f32.mrf.mxu0
      %v952 = vadd.f32 %v783, %v951
      %v953 = vpop.f32.mrf.mxu0
      %v954 = vadd.f32 %v785, %v953
      %955 = vmatmul.bf16.gmra.mxu0 %v504
      %v956 = vpop.f32.mrf.mxu0
      %v957 = vadd.f32 %v788, %v956
      %v958 = vpop.f32.mrf.mxu0
      %v959 = vadd.f32 %v790, %v958
      %960 = vmatmul.bf16.gmra.mxu0 %v506
      %v961 = vpop.f32.mrf.mxu0
      %v962 = vadd.f32 %v793, %v961
      %v963 = vpop.f32.mrf.mxu0
      %v964 = vadd.f32 %v795, %v963
      %965 = vmatmul.bf16.gmra.mxu0 %v508
      %v966 = vpop.f32.mrf.mxu0
      %v967 = vadd.f32 %v798, %v966
      %v968 = vpop.f32.mrf.mxu0
      %v969 = vadd.f32 %v800, %v968
      %970 = vmatmul.bf16.gmra.mxu0 %v510
      %v971 = vpop.f32.mrf.mxu0
      %v972 = vadd.f32 %v803, %v971
      %v973 = vpop.f32.mrf.mxu0
      %v974 = vadd.f32 %v805, %v973
      %975 = vmatmul.bf16.gmra.mxu0 %v512
      %v976 = vpop.f32.mrf.mxu0
      %v977 = vadd.f32 %v808, %v976
      %v978 = vpop.f32.mrf.mxu0
      %v979 = vadd.f32 %v810, %v978
      %980 = vmatmul.bf16.gmra.mxu0 %v514
      %v981 = vpop.f32.mrf.mxu0
      %v982 = vadd.f32 %v813, %v981
      %v983 = vpop.f32.mrf.mxu0
      %v984 = vadd.f32 %v815, %v983
      %985 = vmatmul.bf16.gmra.mxu0 %v516
      %v986 = vpop.f32.mrf.mxu0
      %v987 = vadd.f32 %v818, %v986
      %v988 = vpop.f32.mrf.mxu0
      %v989 = vadd.f32 %v820, %v988
      %990 = vmatmul.bf16.gmra.mxu0 %v518
      %v991 = vpop.f32.mrf.mxu0
      %v992 = vadd.f32 %v823, %v991
      %v993 = vpop.f32.mrf.mxu0
      %v994 = vadd.f32 %v825, %v993
      %995 = vmatmul.bf16.gmra.mxu0 %v520
      %v996 = vpop.f32.mrf.mxu0
      %v997 = vadd.f32 %v828, %v996
      %v998 = vpop.f32.mrf.mxu0
      %v999 = vadd.f32 %v830, %v998
      %1000 = vmatmul.bf16.gmra.mxu0 %v522
      %v1001 = vpop.f32.mrf.mxu0
      %v1002 = vadd.f32 %v833, %v1001
      %v1003 = vpop.f32.mrf.mxu0
      %v1004 = vadd.f32 %v835, %v1003
      %1005 = vmatmul.bf16.gmra.mxu0 %v524
      %v1006 = vpop.f32.mrf.mxu0
      %v1007 = vadd.f32 %v838, %v1006
      %v1008 = vpop.f32.mrf.mxu0
      %v1009 = vadd.f32 %v840, %v1008
      %1010 = vmatmul.bf16.gmra.mxu0 %v526
      %v1011 = vpop.f32.mrf.mxu0
      %v1012 = vadd.f32 %v843, %v1011
      %v1013 = vpop.f32.mrf.mxu0
      %v1014 = vadd.f32 %v845, %v1013
      %1015 = vmatmul.bf16.gmra.mxu0 %v528
      %v1016 = vpop.f32.mrf.mxu0
      %v1017 = vadd.f32 %v848, %v1016
      %v1018 = vpop.f32.mrf.mxu0
      %v1019 = vadd.f32 %v850, %v1018
      %1020 = vmatmul.bf16.gmra.mxu0 %v530
      %v1021 = vpop.f32.mrf.mxu0
      %v1022 = vadd.f32 %v853, %v1021
      %v1023 = vpop.f32.mrf.mxu0
      %v1024 = vadd.f32 %v855, %v1023
      %1025 = vmatmul.bf16.gmra.mxu0 %v532
      %v1026 = vpop.f32.mrf.mxu0
      %v1027 = vadd.f32 %v858, %v1026
      %v1028 = vpop.f32.mrf.mxu0
      %v1029 = vadd.f32 %v860, %v1028
      %1030 = vdwg.mxu0
      %v1031 = vmax.f32 %v872, 0.0
      %v1032 = vmax.f32 %v874, 0.0
      %v1033 = vmax.f32 %v877, 0.0
      %v1034 = vmax.f32 %v879, 0.0
      %v1035 = vmax.f32 %v882, 0.0
      %v1036 = vmax.f32 %v884, 0.0
      %v1037 = vmax.f32 %v887, 0.0
      %v1038 = vmax.f32 %v889, 0.0
      %v1039 = vmax.f32 %v892, 0.0
      %v1040 = vmax.f32 %v894, 0.0
      %v1041 = vmax.f32 %v897, 0.0
      %v1042 = vmax.f32 %v899, 0.0
      %v1043 = vmax.f32 %v902, 0.0
      %v1044 = vmax.f32 %v904, 0.0
      %v1045 = vmax.f32 %v907, 0.0
      %v1046 = vmax.f32 %v909, 0.0
      %v1047 = vmax.f32 %v912, 0.0
      %v1048 = vmax.f32 %v914, 0.0
      %v1049 = vmax.f32 %v917, 0.0
      %v1050 = vmax.f32 %v919, 0.0
      %v1051 = vmax.f32 %v922, 0.0
      %v1052 = vmax.f32 %v924, 0.0
      %v1053 = vmax.f32 %v927, 0.0
      %v1054 = vmax.f32 %v929, 0.0
      %v1055 = vmax.f32 %v932, 0.0
      %v1056 = vmax.f32 %v934, 0.0
      %v1057 = vmax.f32 %v937, 0.0
      %v1058 = vmax.f32 %v939, 0.0
      %v1059 = vmax.f32 %v942, 0.0
      %v1060 = vmax.f32 %v944, 0.0
      %v1061 = vmax.f32 %v947, 0.0
      %v1062 = vmax.f32 %v949, 0.0
      %v1063 = vmax.f32 %v952, 0.0
      %v1064 = vmax.f32 %v954, 0.0
      %v1065 = vmax.f32 %v957, 0.0
      %v1066 = vmax.f32 %v959, 0.0
      %v1067 = vmax.f32 %v962, 0.0
      %v1068 = vmax.f32 %v964, 0.0
      %v1069 = vmax.f32 %v967, 0.0
      %v1070 = vmax.f32 %v969, 0.0
      %v1071 = vmax.f32 %v972, 0.0
      %v1072 = vmax.f32 %v974, 0.0
      %v1073 = vmax.f32 %v977, 0.0
      %v1074 = vmax.f32 %v979, 0.0
      %v1075 = vmax.f32 %v982, 0.0
      %v1076 = vmax.f32 %v984, 0.0
      %v1077 = vmax.f32 %v987, 0.0
      %v1078 = vmax.f32 %v989, 0.0
      %v1079 = vmax.f32 %v992, 0.0
      %v1080 = vmax.f32 %v994, 0.0
      %v1081 = vmax.f32 %v997, 0.0
      %v1082 = vmax.f32 %v999, 0.0
      %v1083 = vmax.f32 %v1002, 0.0
      %v1084 = vmax.f32 %v1004, 0.0
      %v1085 = vmax.f32 %v1007, 0.0
      %v1086 = vmax.f32 %v1009, 0.0
      %v1087 = vmax.f32 %v1012, 0.0
      %v1088 = vmax.f32 %v1014, 0.0
      %v1089 = vmax.f32 %v1017, 0.0
      %v1090 = vmax.f32 %v1019, 0.0
      %v1091 = vmax.f32 %v1022, 0.0
      %v1092 = vmax.f32 %v1024, 0.0
      %v1093 = vmax.f32 %v1027, 0.0
      %v1094 = vmax.f32 %v1029, 0.0
      %v1095 = vpack.c.bf16 %v1031, %v1031
      %v1096 = vpack.c.bf16 %v1032, %v1032
      %v1097 = vpack.c.bf16 %v1033, %v1033
      %v1098 = vpack.c.bf16 %v1034, %v1034
      %v1099 = vpack.c.bf16 %v1035, %v1035
      %v1100 = vpack.c.bf16 %v1036, %v1036
      %v1101 = vpack.c.bf16 %v1037, %v1037
      %v1102 = vpack.c.bf16 %v1038, %v1038
      %v1103 = vpack.c.bf16 %v1039, %v1039
      %v1104 = vpack.c.bf16 %v1040, %v1040
      %v1105 = vpack.c.bf16 %v1041, %v1041
      %v1106 = vpack.c.bf16 %v1042, %v1042
      %v1107 = vpack.c.bf16 %v1043, %v1043
      %v1108 = vpack.c.bf16 %v1044, %v1044
      %v1109 = vpack.c.bf16 %v1045, %v1045
      %v1110 = vpack.c.bf16 %v1046, %v1046
      %v1111 = vpack.c.bf16 %v1047, %v1047
      %v1112 = vpack.c.bf16 %v1048, %v1048
      %v1113 = vpack.c.bf16 %v1049, %v1049
      %v1114 = vpack.c.bf16 %v1050, %v1050
      %v1115 = vpack.c.bf16 %v1051, %v1051
      %v1116 = vpack.c.bf16 %v1052, %v1052
      %v1117 = vpack.c.bf16 %v1053, %v1053
      %v1118 = vpack.c.bf16 %v1054, %v1054
      %v1119 = vpack.c.bf16 %v1055, %v1055
      %v1120 = vpack.c.bf16 %v1056, %v1056
      %v1121 = vpack.c.bf16 %v1057, %v1057
      %v1122 = vpack.c.bf16 %v1058, %v1058
      %v1123 = vpack.c.bf16 %v1059, %v1059
      %v1124 = vpack.c.bf16 %v1060, %v1060
      %v1125 = vpack.c.bf16 %v1061, %v1061
      %v1126 = vpack.c.bf16 %v1062, %v1062
      %v1127 = vpack.c.bf16 %v1063, %v1063
      %v1128 = vpack.c.bf16 %v1064, %v1064
      %v1129 = vpack.c.bf16 %v1065, %v1065
      %v1130 = vpack.c.bf16 %v1066, %v1066
      %v1131 = vpack.c.bf16 %v1067, %v1067
      %v1132 = vpack.c.bf16 %v1068, %v1068
      %v1133 = vpack.c.bf16 %v1069, %v1069
      %v1134 = vpack.c.bf16 %v1070, %v1070
      %v1135 = vpack.c.bf16 %v1071, %v1071
      %v1136 = vpack.c.bf16 %v1072, %v1072
      %v1137 = vpack.c.bf16 %v1073, %v1073
      %v1138 = vpack.c.bf16 %v1074, %v1074
      %v1139 = vpack.c.bf16 %v1075, %v1075
      %v1140 = vpack.c.bf16 %v1076, %v1076
      %v1141 = vpack.c.bf16 %v1077, %v1077
      %v1142 = vpack.c.bf16 %v1078, %v1078
      %v1143 = vpack.c.bf16 %v1079, %v1079
      %v1144 = vpack.c.bf16 %v1080, %v1080
      %v1145 = vpack.c.bf16 %v1081, %v1081
      %v1146 = vpack.c.bf16 %v1082, %v1082
      %v1147 = vpack.c.bf16 %v1083, %v1083
      %v1148 = vpack.c.bf16 %v1084, %v1084
      %v1149 = vpack.c.bf16 %v1085, %v1085
      %v1150 = vpack.c.bf16 %v1086, %v1086
      %v1151 = vpack.c.bf16 %v1087, %v1087
      %v1152 = vpack.c.bf16 %v1088, %v1088
      %v1153 = vpack.c.bf16 %v1089, %v1089
      %v1154 = vpack.c.bf16 %v1090, %v1090
      %v1155 = vpack.c.bf16 %v1091, %v1091
      %v1156 = vpack.c.bf16 %v1092, %v1092
      %v1157 = vpack.c.bf16 %v1093, %v1093
      %v1158 = vpack.c.bf16 %v1094, %v1094
      %1159 = vst [vmem:[%s175] sm:$0xf] %v1095
      %1160 = vst [vmem:[%s175 + $0x4] sm:$0xf] %v1096
      %1161 = vst [vmem:[%s175 + $0x8] sm:$0xf] %v1097
      %1162 = vst [vmem:[%s175 + $0xc] sm:$0xf] %v1098
      %1163 = vst [vmem:[%s175 + $0x10] sm:$0xf] %v1099
      %1164 = vst [vmem:[%s175 + $0x14] sm:$0xf] %v1100
      %1165 = vst [vmem:[%s175 + $0x18] sm:$0xf] %v1101
      %1166 = vst [vmem:[%s175 + $0x1c] sm:$0xf] %v1102
      %1167 = vst [vmem:[%s175 + $0x20] sm:$0xf] %v1103
      %1168 = vst [vmem:[%s175 + $0x24] sm:$0xf] %v1104
      %1169 = vst [vmem:[%s175 + $0x28] sm:$0xf] %v1105
      %1170 = vst [vmem:[%s175 + $0x2c] sm:$0xf] %v1106
      %1171 = vst [vmem:[%s175 + $0x30] sm:$0xf] %v1107
      %1172 = vst [vmem:[%s175 + $0x34] sm:$0xf] %v1108
      %1173 = vst [vmem:[%s175 + $0x38] sm:$0xf] %v1109
      %1174 = vst [vmem:[%s175 + $0x3c] sm:$0xf] %v1110
      %1175 = vst [vmem:[%s175 + $0x40] sm:$0xf] %v1111
      %1176 = vst [vmem:[%s175 + $0x44] sm:$0xf] %v1112
      %1177 = vst [vmem:[%s175 + $0x48] sm:$0xf] %v1113
      %1178 = vst [vmem:[%s175 + $0x4c] sm:$0xf] %v1114
      %1179 = vst [vmem:[%s175 + $0x50] sm:$0xf] %v1115
      %1180 = vst [vmem:[%s175 + $0x54] sm:$0xf] %v1116
      %1181 = vst [vmem:[%s175 + $0x58] sm:$0xf] %v1117
      %1182 = vst [vmem:[%s175 + $0x5c] sm:$0xf] %v1118
      %1183 = vst [vmem:[%s175 + $0x60] sm:$0xf] %v1119
      %1184 = vst [vmem:[%s175 + $0x64] sm:$0xf] %v1120
      %1185 = vst [vmem:[%s175 + $0x68] sm:$0xf] %v1121
      %1186 = vst [vmem:[%s175 + $0x6c] sm:$0xf] %v1122
      %1187 = vst [vmem:[%s175 + $0x70] sm:$0xf] %v1123
      %1188 = vst [vmem:[%s175 + $0x74] sm:$0xf] %v1124
      %1189 = vst [vmem:[%s175 + $0x78] sm:$0xf] %v1125
      %1190 = vst [vmem:[%s175 + $0x7c] sm:$0xf] %v1126
      %1191 = vst [vmem:[%s175 + $0x80] sm:$0xf] %v1127
      %1192 = vst [vmem:[%s175 + $0x84] sm:$0xf] %v1128
      %1193 = vst [vmem:[%s175 + $0x88] sm:$0xf] %v1129
      %1194 = vst [vmem:[%s175 + $0x8c] sm:$0xf] %v1130
      %1195 = vst [vmem:[%s175 + $0x90] sm:$0xf] %v1131
      %1196 = vst [vmem:[%s175 + $0x94] sm:$0xf] %v1132
      %1197 = vst [vmem:[%s175 + $0x98] sm:$0xf] %v1133
      %1198 = vst [vmem:[%s175 + $0x9c] sm:$0xf] %v1134
      %1199 = vst [vmem:[%s175 + $0xa0] sm:$0xf] %v1135
      %1200 = vst [vmem:[%s175 + $0xa4] sm:$0xf] %v1136
      %1201 = vst [vmem:[%s175 + $0xa8] sm:$0xf] %v1137
      %1202 = vst [vmem:[%s175 + $0xac] sm:$0xf] %v1138
      %1203 = vst [vmem:[%s175 + $0xb0] sm:$0xf] %v1139
      %1204 = vst [vmem:[%s175 + $0xb4] sm:$0xf] %v1140
      %1205 = vst [vmem:[%s175 + $0xb8] sm:$0xf] %v1141
      %1206 = vst [vmem:[%s175 + $0xbc] sm:$0xf] %v1142
      %1207 = vst [vmem:[%s175 + $0xc0] sm:$0xf] %v1143
      %1208 = vst [vmem:[%s175 + $0xc4] sm:$0xf] %v1144
      %1209 = vst [vmem:[%s175 + $0xc8] sm:$0xf] %v1145
      %1210 = vst [vmem:[%s175 + $0xcc] sm:$0xf] %v1146
      %1211 = vst [vmem:[%s175 + $0xd0] sm:$0xf] %v1147
      %1212 = vst [vmem:[%s175 + $0xd4] sm:$0xf] %v1148
      %1213 = vst [vmem:[%s175 + $0xd8] sm:$0xf] %v1149
      %1214 = vst [vmem:[%s175 + $0xdc] sm:$0xf] %v1150
      %1215 = vst [vmem:[%s175 + $0xe0] sm:$0xf] %v1151
      %1216 = vst [vmem:[%s175 + $0xe4] sm:$0xf] %v1152
      %1217 = vst [vmem:[%s175 + $0xe8] sm:$0xf] %v1153
      %1218 = vst [vmem:[%s175 + $0xec] sm:$0xf] %v1154
      %1219 = vst [vmem:[%s175 + $0xf0] sm:$0xf] %v1155
      %1220 = vst [vmem:[%s175 + $0xf4] sm:$0xf] %v1156
      %1221 = vst [vmem:[%s175 + $0xf8] sm:$0xf] %v1157
      %1222 = vst [vmem:[%s175 + $0xfc] sm:$0xf] %v1158
      %s1223 = smul.u32 64, %s14
      %p1224 = scmp.lt.s32.totalorder %s1223, 127
      %s1225 = scalar_select %p1224, %s1223, 127
      %s1226 = smul.addr %s1225, 4
      %s1227 = scalar_lea.vmem %s3, %s1226
      // Predicated region
      $region33: #{encoder_forward.3} parent=31 // pred_check
        %p1228 = pneg %p100
      $region34: #{encoder_forward.3} parent=31 // pred_check_branch
        %1230 = sbr.rel (%p1228) target = $region36
      $region35: #{encoder_forward.3} parent=31 // pred_region
        %s1231 = smul.u32 64, %s14
      $region36: #{encoder_forward.3} parent=31 // pred_fallthru
        _
    $region32: #{encoder_forward.3} parent=5 // pred_fallthru
      _
    %p1232 = scmp.le.s32.totalorder 2, %s9
    // Predicated region
    $region37: #{encoder_forward.3} parent=5 // pred_check
      %p1233 = pneg %p1232
    $region38: #{encoder_forward.3} parent=5 // pred_check_branch
      %1235 = sbr.rel (%p1233) target = $region40
    $region39: #{encoder_forward.3} parent=5 // pred_region
      %s1236 = ssub.s32 %s9, 2
      // Predicated region
      $region41: #{encoder_forward.3} parent=39 // pred_check
        %p1237 = pneg %p106
      $region42: #{encoder_forward.3} parent=39 // pred_check_branch
        %1239 = sbr.rel (%p1237) target = $region44
      $region43: #{encoder_forward.3} parent=39 // pred_region
        %s1240 = smul.u32 64, %s15
        %p1241 = scmp.lt.s32.totalorder %s1240, 127
        %s1242 = scalar_select %p1241, %s1240, 127
        %s1243 = smul.addr %s1242, 4
        %s1244 = scalar_lea.vmem %s3, %s1243
      $region44: #{encoder_forward.3} parent=39 // pred_fallthru
        _
    $region40: #{encoder_forward.3} parent=5 // pred_fallthru
      _
  $region6: #{encoder_forward.3} parent=0 // loop_footer
    %s13 = sadd.s32 1, %s9
  $region7: #{encoder_forward.3} parent=0 // loop_footer_branch
    %8 = sbr.rel target = $region3
  $region8: #{encoder_forward.3} parent=0 // loop_exit
    _

// kernel: encoder_forward.4
$region0: #{encoder_forward.4}
  #allocation0 [shape = 'u32[]', space=smem, size = 0x4, offset = 0x4, fixed_abs, tag = 'smem constant byte address 0x4 - core index']
  #allocation1 [shape = 'u32[72,128]{1,0:T(1,128)}', space=vmem, size = 0x9000, scoped, tag = 'internal scratch']
  %s0 = inlined_call_operand.vmem [shape: bf16[160,512], index: 0, kind: input, shape index: {}]
  %s1 = inlined_call_operand.vmem [shape: bf16[512,128], index: 1, kind: input, shape index: {}]
  %s2 = inlined_call_operand.vmem [shape: f32[1,128], index: 2, kind: input, shape index: {}]
  %s3 = inlined_call_operand.vmem [shape: bf16[160,128], index: 3, kind: output, shape index: {}]
  %s4 = sld [smem:[#allocation0]]
  $region45: #{encoder_forward.4} parent=0
    _
  %s6 = ssub.s32 1, %s4
  %s7 = scalar_select 0, %s6, %s4
  loop: start=0, step=1, limit=4
  $region2: #{encoder_forward.4} parent=0 // loop_pre_header
    _
  $region3: #{encoder_forward.4} parent=0 // loop_header
    %s9 = sphi 0, %s13
    %p10 = scmp.ge.s32.totalorder %s9, 4
    %s19 = sphi 0, %s21
    %s22 = sphi 0, %s19
    %s23 = sphi 0, %s22
    %s39 = sphi 0, %s23
    %s43 = sphi 0, %s43
    %s45 = sphi 0, %s43
    %s46 = sphi 0, %s45
    %s60 = sphi 0, %s46
    %s64 = sphi 0, %s64
    %s66 = sphi 0, %s64
    %s67 = sphi 0, %s66
    %s81 = sphi 0, %s67
    %s87 = sphi 0, %s89
    %s90 = sphi 0, %s87
    %s91 = sphi 0, %s90
    %s107 = sphi 0, %s91
  $region4: #{encoder_forward.4} parent=0 // loop_header_branch
    %12 = sbr.rel (%p10) target = $region8
  $region5: #{encoder_forward.4} parent=0 // loop_body
    %s14 = ssub.s32 %s9, 1
    %s15 = ssub.s32 %s9, 2
    %s16 = sadd.s32 %s9, 1
    %s17 = ssub.s32 %s9, %s16
    %p18 = scmp.eq.s32.totalorder %s17, 0
    %s20 = sadd.s32 %s19, 1
    %s21 = scalar_select %p18, %s19, %s20
    %p24 = pneg %p18
    %p25 = scmp.eq.s32.totalorder %s9, 1
    %p26 = por %p24, %p25
    %p27 = scmp.ne.s32.totalorder %s19, %s22
    %p28 = scmp.eq.s32.totalorder %s9, 0
    %p29 = por %p27, %p28
    %p30 = scmp.ne.s32.totalorder %s19, %s22
    %p31 = scmp.eq.s32.totalorder %s14, 1
    %p32 = por %p30, %p31
    %p33 = scmp.ne.s32.totalorder %s22, %s23
    %p34 = scmp.eq.s32.totalorder %s14, 0
    %p35 = por %p33, %p34
    %p36 = scmp.ne.s32.totalorder %s22, %s23
    %p37 = scmp.eq.s32.totalorder %s15, 1
    %p38 = por %p36, %p37
    %p40 = scmp.ne.s32.totalorder %s23, %s39
    %p41 = scmp.eq.s32.totalorder %s15, 0
    %p42 = por %p40, %p41
    %s44 = sadd.s32 %s43, 1
    %p47 = scmp.eq.s32.totalorder %s9, 1
    %p48 = scmp.ne.s32.totalorder %s43, %s45
    %p49 = scmp.eq.s32.totalorder %s9, 0
    %p50 = por %p48, %p49
    %p51 = scmp.ne.s32.totalorder %s43, %s45
    %p52 = scmp.eq.s32.totalorder %s14, 1
    %p53 = por %p51, %p52
    %p54 = scmp.ne.s32.totalorder %s45, %s46
    %p55 = scmp.eq.s32.totalorder %s14, 0
    %p56 = por %p54, %p55
    %p57 = scmp.ne.s32.totalorder %s45, %s46
    %p58 = scmp.eq.s32.totalorder %s15, 1
    %p59 = por %p57, %p58
    %p61 = scmp.ne.s32.totalorder %s46, %s60
    %p62 = scmp.eq.s32.totalorder %s15, 0
    %p63 = por %p61, %p62
    %s65 = sadd.s32 %s64, 1
    %p68 = scmp.eq.s32.totalorder %s9, 1
    %p69 = scmp.ne.s32.totalorder %s64, %s66
    %p70 = scmp.eq.s32.totalorder %s9, 0
    %p71 = por %p69, %p70
    %p72 = scmp.ne.s32.totalorder %s64, %s66
    %p73 = scmp.eq.s32.totalorder %s14, 1
    %p74 = por %p72, %p73
    %p75 = scmp.ne.s32.totalorder %s66, %s67
    %p76 = scmp.eq.s32.totalorder %s14, 0
    %p77 = por %p75, %p76
    %p78 = scmp.ne.s32.totalorder %s66, %s67
    %p79 = scmp.eq.s32.totalorder %s15, 1
    %p80 = por %p78, %p79
    %p82 = scmp.ne.s32.totalorder %s67, %s81
    %p83 = scmp.eq.s32.totalorder %s15, 0
    %p84 = por %p82, %p83
    %s85 = ssub.s32 %s9, %s16
    %p86 = scmp.eq.s32.totalorder %s85, 0
    %s88 = sadd.s32 %s87, 1
    %s89 = scalar_select %p86, %s87, %s88
    %p92 = pneg %p86
    %p93 = scmp.eq.s32.totalorder %s9, 1
    %p94 = por %p92, %p93
    %p95 = scmp.ne.s32.totalorder %s87, %s90
    %p96 = scmp.eq.s32.totalorder %s9, 0
    %p97 = por %p95, %p96
    %p98 = scmp.ne.s32.totalorder %s87, %s90
    %p99 = scmp.eq.s32.totalorder %s14, 1
    %p100 = por %p98, %p99
    %p101 = scmp.ne.s32.totalorder %s90, %s91
    %p102 = scmp.eq.s32.totalorder %s14, 0
    %p103 = por %p101, %p102
    %p104 = scmp.ne.s32.totalorder %s90, %s91
    %p105 = scmp.eq.s32.totalorder %s15, 1
    %p106 = por %p104, %p105
    %p108 = scmp.ne.s32.totalorder %s91, %s107
    %p109 = scmp.eq.s32.totalorder %s15, 0
    %p110 = por %p108, %p109
    %p111 = scmp.le.s32.totalorder 1, %s9
    %p112 = scmp.lt.s32.totalorder %s9, 3
    %p113 = pnand %p111, %p112
    %p114 = pneg %p113
    // Predicated region
    $region9: #{encoder_forward.4} parent=5 // pred_check
      _
    $region10: #{encoder_forward.4} parent=5 // pred_check_branch
      %116 = sbr.rel (%p113) target = $region12
    $region11: #{encoder_forward.4} parent=5 // pred_region
      %s117 = ssub.s32 %s9, 1
      // Predicated region
      $region13: #{encoder_forward.4} parent=11 // pred_check
        %p118 = pneg %p56
      $region14: #{encoder_forward.4} parent=11 // pred_check_branch
        %120 = sbr.rel (%p118) target = $region16
      $region15: #{encoder_forward.4} parent=11 // pred_region
        _
      $region16: #{encoder_forward.4} parent=11 // pred_fallthru
        _
      // Predicated region
      $region17: #{encoder_forward.4} parent=11 // pred_check
        %p121 = pneg %p77
      $region18: #{encoder_forward.4} parent=11 // pred_check_branch
        %123 = sbr.rel (%p121) target = $region20
      $region19: #{encoder_forward.4} parent=11 // pred_region
        _
      $region20: #{encoder_forward.4} parent=11 // pred_fallthru
        _
    $region12: #{encoder_forward.4} parent=5 // pred_fallthru
      _
    %p124 = scmp.lt.s32.totalorder %s9, 2
    // Predicated region
    $region21: #{encoder_forward.4} parent=5 // pred_check
      %p125 = pneg %p124
    $region22: #{encoder_forward.4} parent=5 // pred_check_branch
      %127 = sbr.rel (%p125) target = $region24
    $region23: #{encoder_forward.4} parent=5 // pred_region
      // Predicated region
      $region25: #{encoder_forward.4} parent=23 // pred_check
        %p128 = pneg %p29
      $region26: #{encoder_forward.4} parent=23 // pred_check_branch
        %130 = sbr.rel (%p128) target = $region28
      $region27: #{encoder_forward.4} parent=23 // pred_region
        %s131 = smul.u32 10, %s9
        %p132 = scmp.lt.s32.totalorder %s131, 19
        %s133 = scalar_select %p132, %s131, 19
        %s134 = smul.addr %s133, 4
        %s135 = smul.addr %s134, 4
        %s136 = scalar_lea.vmem %s0, %s135
        %s137 = smul.u32 10, %s9
      $region28: #{encoder_forward.4} parent=23 // pred_fallthru
        _
    $region24: #{encoder_forward.4} parent=5 // pred_fallthru
      _
    %p138 = scmp.le.s32.totalorder 1, %s9
    %p139 = scmp.lt.s32.totalorder %s9, 3
    %p140 = pnand %p138, %p139
    %p141 = pneg %p140
    // Predicated region
    $region29: #{encoder_forward.4} parent=5 // pred_check
      _
    $region30: #{encoder_forward.4} parent=5 // pred_check_branch
      %143 = sbr.rel (%p140) target = $region32
    $region31: #{encoder_forward.4} parent=5 // pred_region
      %s144 = ssub.s32 %s9, 1
      %s145 = smul.u32 10, %s14
      %p146 = scmp.lt.s32.totalorder %s145, 19
      %s147 = scalar_select %p146, %s145, 19
      %s148 = smul.addr %s147, 4
      %s149 = smul.addr %s148, 4
      %s150 = scalar_lea.vmem %s0, %s149
      %p151 = pneg %p35
      %p152 = pneg %p32
      %p153 = pneg %p56
      %p154 = pneg %p53
      %p155 = pneg %p77
      %p156 = pneg %p74
      %p157 = pneg %p103
      %p158 = pneg %p100
      %s159 = smul.u32 10, %s14
      %p160 = scmp.lt.s32.totalorder %s159, 19
      %s161 = scalar_select %p160, %s159, 19
      %s162 = smul.addr %s161, 4
      %s163 = scalar_lea.vmem %s3, %s162
      %s164 = smul.u32 10, %s14
      %p165 = scmp.lt.s32.totalorder %s164, 19
      %s166 = scalar_select %p165, %s164, 19
      %s167 = smul.addr %s166, 4
      %s168 = smul.addr %s167, 4
      %s169 = scalar_lea.vmem %s0, %s168
      %s170 = smul.u32 10, %s14
      %s171 = smul.u32 10, %s14
      %p172 = scmp.lt.s32.totalorder %s171, 19
      %s173 = scalar_select %p172, %s171, 19
      %s174 = smul.addr %s173, 4
      %s175 = scalar_lea.vmem %s3, %s174
      %s176 = smul.u32 10, %s14
      %v177 = vld [vmem:[%s169] sm:$0xff]
      %v178 = vld [vmem:[%s169 + $0x8] sm:$0xff]
      %v179 = vld [vmem:[%s169 + $0x10] sm:$0xff]
      %v180 = vld [vmem:[%s169 + $0x18] sm:$0xff]
      %v181 = vld [vmem:[%s169 + $0x20] sm:$0xff]
      %v182 = vld [vmem:[%s169 + $0x28] sm:$0xff]
      %v183 = vld [vmem:[%s169 + $0x30] sm:$0xff]
      %v184 = vld [vmem:[%s169 + $0x38] sm:$0xff]
      %v185 = vld [vmem:[%s169 + $0x40] sm:$0xff]
      %v186 = vld [vmem:[%s169 + $0x48] sm:$0xff]
      %v187 = vld [vmem:[%s169 + $0x50] sm:$0xff]
      %v188 = vld [vmem:[%s169 + $0x58] sm:$0xff]
      %v189 = vld [vmem:[%s169 + $0x60] sm:$0xff]
      %v190 = vld [vmem:[%s169 + $0x68] sm:$0xff]
      %v191 = vld [vmem:[%s169 + $0x70] sm:$0xff]
      %v192 = vld [vmem:[%s169 + $0x78] sm:$0xff]
      %v193 = vld [vmem:[%s169 + $0x80] sm:$0xff]
      %v194 = vld [vmem:[%s169 + $0x88] sm:$0xff]
      %v195 = vld [vmem:[%s169 + $0x90] sm:$0xff]
      %v196 = vld [vmem:[%s169 + $0x98] sm:$0xff]
      %v197 = vld [vmem:[%s1] sm:$0xf]
      %v198 = vld [vmem:[%s1 + $0x4] sm:$0xf]
      %v199 = vld [vmem:[%s1 + $0x8] sm:$0xf]
      %v200 = vld [vmem:[%s1 + $0xc] sm:$0xf]
      %v201 = vld [vmem:[%s1 + $0x10] sm:$0xf]
      %v202 = vld [vmem:[%s1 + $0x14] sm:$0xf]
      %v203 = vld [vmem:[%s1 + $0x18] sm:$0xf]
      %v204 = vld [vmem:[%s1 + $0x1c] sm:$0xf]
      %v205 = vld [vmem:[%s1 + $0x20] sm:$0xf]
      %v206 = vld [vmem:[%s1 + $0x24] sm:$0xf]
      %v207 = vld [vmem:[%s1 + $0x28] sm:$0xf]
      %v208 = vld [vmem:[%s1 + $0x2c] sm:$0xf]
      %v209 = vld [vmem:[%s1 + $0x30] sm:$0xf]
      %v210 = vld [vmem:[%s1 + $0x34] sm:$0xf]
      %v211 = vld [vmem:[%s1 + $0x38] sm:$0xf]
      %v212 = vld [vmem:[%s1 + $0x3c] sm:$0xf]
      %v213 = vld [vmem:[%s1 + $0x40] sm:$0xf]
      %v214 = vld [vmem:[%s1 + $0x44] sm:$0xf]
      %v215 = vld [vmem:[%s1 + $0x48] sm:$0xf]
      %v216 = vld [vmem:[%s1 + $0x4c] sm:$0xf]
      %v217 = vld [vmem:[%s1 + $0x50] sm:$0xf]
      %v218 = vld [vmem:[%s1 + $0x54] sm:$0xf]
      %v219 = vld [vmem:[%s1 + $0x58] sm:$0xf]
      %v220 = vld [vmem:[%s1 + $0x5c] sm:$0xf]
      %v221 = vld [vmem:[%s1 + $0x60] sm:$0xf]
      %v222 = vld [vmem:[%s1 + $0x64] sm:$0xf]
      %v223 = vld [vmem:[%s1 + $0x68] sm:$0xf]
      %v224 = vld [vmem:[%s1 + $0x6c] sm:$0xf]
      %v225 = vld [vmem:[%s1 + $0x70] sm:$0xf]
      %v226 = vld [vmem:[%s1 + $0x74] sm:$0xf]
      %v227 = vld [vmem:[%s1 + $0x78] sm:$0xf]
      %v228 = vld [vmem:[%s1 + $0x7c] sm:$0xf]
      %v229 = vld [vmem:[%s1 + $0x80] sm:$0xf]
      %v230 = vld [vmem:[%s1 + $0x84] sm:$0xf]
      %v231 = vld [vmem:[%s1 + $0x88] sm:$0xf]
      %v232 = vld [vmem:[%s1 + $0x8c] sm:$0xf]
      %v233 = vld [vmem:[%s1 + $0x90] sm:$0xf]
      %v234 = vld [vmem:[%s1 + $0x94] sm:$0xf]
      %v235 = vld [vmem:[%s1 + $0x98] sm:$0xf]
      %v236 = vld [vmem:[%s1 + $0x9c] sm:$0xf]
      %v237 = vld [vmem:[%s1 + $0xa0] sm:$0xf]
      %v238 = vld [vmem:[%s1 + $0xa4] sm:$0xf]
      %v239 = vld [vmem:[%s1 + $0xa8] sm:$0xf]
      %v240 = vld [vmem:[%s1 + $0xac] sm:$0xf]
      %v241 = vld [vmem:[%s1 + $0xb0] sm:$0xf]
      %v242 = vld [vmem:[%s1 + $0xb4] sm:$0xf]
      %v243 = vld [vmem:[%s1 + $0xb8] sm:$0xf]
      %v244 = vld [vmem:[%s1 + $0xbc] sm:$0xf]
      %v245 = vld [vmem:[%s1 + $0xc0] sm:$0xf]
      %v246 = vld [vmem:[%s1 + $0xc4] sm:$0xf]
      %v247 = vld [vmem:[%s1 + $0xc8] sm:$0xf]
      %v248 = vld [vmem:[%s1 + $0xcc] sm:$0xf]
      %v249 = vld [vmem:[%s1 + $0xd0] sm:$0xf]
      %v250 = vld [vmem:[%s1 + $0xd4] sm:$0xf]
      %v251 = vld [vmem:[%s1 + $0xd8] sm:$0xf]
      %v252 = vld [vmem:[%s1 + $0xdc] sm:$0xf]
      %v253 = vld [vmem:[%s1 + $0xe0] sm:$0xf]
      %v254 = vld [vmem:[%s1 + $0xe4] sm:$0xf]
      %v255 = vld [vmem:[%s1 + $0xe8] sm:$0xf]
      %v256 = vld [vmem:[%s1 + $0xec] sm:$0xf]
      %v257 = vld [vmem:[%s1 + $0xf0] sm:$0xf]
      %v258 = vld [vmem:[%s1 + $0xf4] sm:$0xf]
      %v259 = vld [vmem:[%s1 + $0xf8] sm:$0xf]
      %v260 = vld [vmem:[%s1 + $0xfc] sm:$0xf]
      %v261 = vld [vmem:[%s2] sm:$0x1]
      %v263 = vperm.slane %v261, 0
      %v285 = vunpack.c.l.b16 %v177
      %v286 = vunpack.c.h.b16 %v177
      %v287 = vunpack.c.l.b16 %v178
      %v288 = vunpack.c.h.b16 %v178
      %v289 = vunpack.c.l.b16 %v179
      %v290 = vunpack.c.h.b16 %v179
      %v291 = vunpack.c.l.b16 %v180
      %v292 = vunpack.c.h.b16 %v180
      %v293 = vunpack.c.l.b16 %v181
      %v294 = vunpack.c.h.b16 %v181
      %v295 = vunpack.c.l.b16 %v182
      %v296 = vunpack.c.h.b16 %v182
      %v297 = vunpack.c.l.b16 %v183
      %v298 = vunpack.c.h.b16 %v183
      %v299 = vunpack.c.l.b16 %v184
      %v300 = vunpack.c.h.b16 %v184
      %v301 = vunpack.c.l.b16 %v185
      %v302 = vunpack.c.h.b16 %v185
      %v303 = vunpack.c.l.b16 %v186
      %v304 = vunpack.c.h.b16 %v186
      %v305 = vunpack.c.l.b16 %v187
      %v306 = vunpack.c.h.b16 %v187
      %v307 = vunpack.c.l.b16 %v188
      %v308 = vunpack.c.h.b16 %v188
      %v309 = vunpack.c.l.b16 %v189
      %v310 = vunpack.c.h.b16 %v189
      %v311 = vunpack.c.l.b16 %v190
      %v312 = vunpack.c.h.b16 %v190
      %v313 = vunpack.c.l.b16 %v191
      %v314 = vunpack.c.h.b16 %v191
      %v315 = vunpack.c.l.b16 %v192
      %v316 = vunpack.c.h.b16 %v192
      %v317 = vunpack.c.l.b16 %v193
      %v318 = vunpack.c.h.b16 %v193
      %v319 = vunpack.c.l.b16 %v194
      %v320 = vunpack.c.h.b16 %v194
      %v321 = vunpack.c.l.b16 %v195
      %v322 = vunpack.c.h.b16 %v195
      %v323 = vunpack.c.l.b16 %v196
      %v324 = vunpack.c.h.b16 %v196
      %v325 = vpack.c.b16 %v289, %v285
      %v326 = vpack.c.b16 %v290, %v286
      %v327 = vpack.c.b16 %v291, %v287
      %v328 = vpack.c.b16 %v292, %v288
      %v329 = vpack.c.b16 %v297, %v293
      %v330 = vpack.c.b16 %v298, %v294
      %v331 = vpack.c.b16 %v299, %v295
      %v332 = vpack.c.b16 %v300, %v296
      %v333 = vpack.c.b16 %v305, %v301
      %v334 = vpack.c.b16 %v306, %v302
      %v335 = vpack.c.b16 %v307, %v303
      %v336 = vpack.c.b16 %v308, %v304
      %v337 = vpack.c.b16 %v313, %v309
      %v338 = vpack.c.b16 %v314, %v310
      %v339 = vpack.c.b16 %v315, %v311
      %v340 = vpack.c.b16 %v316, %v312
      %v341 = vpack.c.b16 %v321, %v317
      %v342 = vpack.c.b16 %v322, %v318
      %v343 = vpack.c.b16 %v323, %v319
      %v344 = vpack.c.b16 %v324, %v320
      %v429 = vunpack.c.l.b16 %v197
      %v430 = vunpack.c.l.b16 %v198
      %v431 = vunpack.c.l.b16 %v199
      %v432 = vunpack.c.l.b16 %v200
      %v433 = vunpack.c.l.b16 %v201
      %v434 = vunpack.c.l.b16 %v202
      %v435 = vunpack.c.l.b16 %v203
      %v436 = vunpack.c.l.b16 %v204
      %v437 = vunpack.c.l.b16 %v205
      %v438 = vunpack.c.l.b16 %v206
      %v439 = vunpack.c.l.b16 %v207
      %v440 = vunpack.c.l.b16 %v208
      %v441 = vunpack.c.l.b16 %v209
      %v442 = vunpack.c.l.b16 %v210
      %v443 = vunpack.c.l.b16 %v211
      %v444 = vunpack.c.l.b16 %v212
      %v445 = vunpack.c.l.b16 %v213
      %v446 = vunpack.c.l.b16 %v214
      %v447 = vunpack.c.l.b16 %v215
      %v448 = vunpack.c.l.b16 %v216
      %v449 = vunpack.c.l.b16 %v217
      %v450 = vunpack.c.l.b16 %v218
      %v451 = vunpack.c.l.b16 %v219
      %v452 = vunpack.c.l.b16 %v220
      %v453 = vunpack.c.l.b16 %v221
      %v454 = vunpack.c.l.b16 %v222
      %v455 = vunpack.c.l.b16 %v223
      %v456 = vunpack.c.l.b16 %v224
      %v457 = vunpack.c.l.b16 %v225
      %v458 = vunpack.c.l.b16 %v226
      %v459 = vunpack.c.l.b16 %v227
      %v460 = vunpack.c.l.b16 %v228
      %v461 = vunpack.c.l.b16 %v229
      %v462 = vunpack.c.l.b16 %v230
      %v463 = vunpack.c.l.b16 %v231
      %v464 = vunpack.c.l.b16 %v232
      %v465 = vunpack.c.l.b16 %v233
      %v466 = vunpack.c.l.b16 %v234
      %v467 = vunpack.c.l.b16 %v235
      %v468 = vunpack.c.l.b16 %v236
      %v469 = vunpack.c.l.b16 %v237
      %v470 = vunpack.c.l.b16 %v238
      %v471 = vunpack.c.l.b16 %v239
      %v472 = vunpack.c.l.b16 %v240
      %v473 = vunpack.c.l.b16 %v241
      %v474 = vunpack.c.l.b16 %v242
      %v475 = vunpack.c.l.b16 %v243
      %v476 = vunpack.c.l.b16 %v244
      %v477 = vunpack.c.l.b16 %v245
      %v478 = vunpack.c.l.b16 %v246
      %v479 = vunpack.c.l.b16 %v247
      %v480 = vunpack.c.l.b16 %v248
      %v481 = vunpack.c.l.b16 %v249
      %v482 = vunpack.c.l.b16 %v250
      %v483 = vunpack.c.l.b16 %v251
      %v484 = vunpack.c.l.b16 %v252
      %v485 = vunpack.c.l.b16 %v253
      %v486 = vunpack.c.l.b16 %v254
      %v487 = vunpack.c.l.b16 %v255
      %v488 = vunpack.c.l.b16 %v256
      %v489 = vunpack.c.l.b16 %v257
      %v490 = vunpack.c.l.b16 %v258
      %v491 = vunpack.c.l.b16 %v259
      %v492 = vunpack.c.l.b16 %v260
      %v493 = vpack.c.b16 %v430, %v429
      %v494 = vpack.c.b16 %v432, %v431
      %v495 = vpack.c.b16 %v434, %v433
      %v496 = vpack.c.b16 %v436, %v435
      %v497 = vpack.c.b16 %v438, %v437
      %v498 = vpack.c.b16 %v440, %v439
      %v499 = vpack.c.b16 %v442, %v441
      %v500 = vpack.c.b16 %v444, %v443
      %v501 = vpack.c.b16 %v446, %v445
      %v502 = vpack.c.b16 %v448, %v447
      %v503 = vpack.c.b16 %v450, %v449
      %v504 = vpack.c.b16 %v452, %v451
      %v505 = vpack.c.b16 %v454, %v453
      %v506 = vpack.c.b16 %v456, %v455
      %v507 = vpack.c.b16 %v458, %v457
      %v508 = vpack.c.b16 %v460, %v459
      %v509 = vpack.c.b16 %v462, %v461
      %v510 = vpack.c.b16 %v464, %v463
      %v511 = vpack.c.b16 %v466, %v465
      %v512 = vpack.c.b16 %v468, %v467
      %v513 = vpack.c.b16 %v470, %v469
      %v514 = vpack.c.b16 %v472, %v471
      %v515 = vpack.c.b16 %v474, %v473
      %v516 = vpack.c.b16 %v476, %v475
      %v517 = vpack.c.b16 %v478, %v477
      %v518 = vpack.c.b16 %v480, %v479
      %v519 = vpack.c.b16 %v482, %v481
      %v520 = vpack.c.b16 %v484, %v483
      %v521 = vpack.c.b16 %v486, %v485
      %v522 = vpack.c.b16 %v488, %v487
      %v523 = vpack.c.b16 %v490, %v489
      %v524 = vpack.c.b16 %v492, %v491
      %557 = vmatpush.bf16.msra.mxu0 %v500
      %558 = vmatpush.bf16.msra.mxu0 %v499
      %559 = vmatpush.bf16.msra.mxu0 %v498
      %560 = vmatpush.bf16.msra.mxu0 %v497
      %561 = vmatpush.bf16.msra.mxu0 %v496
      %562 = vmatpush.bf16.msra.mxu0 %v495
      %563 = vmatpush.bf16.msra.mxu0 %v494
      %564 = vmatpush.bf16.msra.mxu0 %v493
      %565 = vmatmul.bf16.gmra.mxu0 %v325
      %v566 = vpop.f32.mrf.mxu0
      %v567 = vadd.f32 %v263, %v566
      %v568 = vpop.f32.mrf.mxu0
      %v569 = vadd.f32 %v263, %v568
      %570 = vmatmul.bf16.gmra.mxu0 %v329
      %v571 = vpop.f32.mrf.mxu0
      %v572 = vadd.f32 %v263, %v571
      %v573 = vpop.f32.mrf.mxu0
      %v574 = vadd.f32 %v263, %v573
      %575 = vmatmul.bf16.gmra.mxu0 %v333
      %v576 = vpop.f32.mrf.mxu0
      %v577 = vadd.f32 %v263, %v576
      %v578 = vpop.f32.mrf.mxu0
      %v579 = vadd.f32 %v263, %v578
      %580 = vmatmul.bf16.gmra.mxu0 %v337
      %v581 = vpop.f32.mrf.mxu0
      %v582 = vadd.f32 %v263, %v581
      %v583 = vpop.f32.mrf.mxu0
      %v584 = vadd.f32 %v263, %v583
      %585 = vmatmul.bf16.gmra.mxu0 %v341
      %v586 = vpop.f32.mrf.mxu0
      %v587 = vadd.f32 %v263, %v586
      %v588 = vpop.f32.mrf.mxu0
      %v589 = vadd.f32 %v263, %v588
      %590 = vdwg.mxu0
      %591 = vmatpush.bf16.msra.mxu0 %v508
      %592 = vmatpush.bf16.msra.mxu0 %v507
      %593 = vmatpush.bf16.msra.mxu0 %v506
      %594 = vmatpush.bf16.msra.mxu0 %v505
      %595 = vmatpush.bf16.msra.mxu0 %v504
      %596 = vmatpush.bf16.msra.mxu0 %v503
      %597 = vmatpush.bf16.msra.mxu0 %v502
      %598 = vmatpush.bf16.msra.mxu0 %v501
      %599 = vmatmul.bf16.gmra.mxu0 %v326
      %v600 = vpop.f32.mrf.mxu0
      %v601 = vadd.f32 %v567, %v600
      %v602 = vpop.f32.mrf.mxu0
      %v603 = vadd.f32 %v569, %v602
      %604 = vmatmul.bf16.gmra.mxu0 %v330
      %v605 = vpop.f32.mrf.mxu0
      %v606 = vadd.f32 %v572, %v605
      %v607 = vpop.f32.mrf.mxu0
      %v608 = vadd.f32 %v574, %v607
      %609 = vmatmul.bf16.gmra.mxu0 %v334
      %v610 = vpop.f32.mrf.mxu0
      %v611 = vadd.f32 %v577, %v610
      %v612 = vpop.f32.mrf.mxu0
      %v613 = vadd.f32 %v579, %v612
      %614 = vmatmul.bf16.gmra.mxu0 %v338
      %v615 = vpop.f32.mrf.mxu0
      %v616 = vadd.f32 %v582, %v615
      %v617 = vpop.f32.mrf.mxu0
      %v618 = vadd.f32 %v584, %v617
      %619 = vmatmul.bf16.gmra.mxu0 %v342
      %v620 = vpop.f32.mrf.mxu0
      %v621 = vadd.f32 %v587, %v620
      %v622 = vpop.f32.mrf.mxu0
      %v623 = vadd.f32 %v589, %v622
      %624 = vdwg.mxu0
      %625 = vmatpush.bf16.msra.mxu0 %v516
      %626 = vmatpush.bf16.msra.mxu0 %v515
      %627 = vmatpush.bf16.msra.mxu0 %v514
      %628 = vmatpush.bf16.msra.mxu0 %v513
      %629 = vmatpush.bf16.msra.mxu0 %v512
      %630 = vmatpush.bf16.msra.mxu0 %v511
      %631 = vmatpush.bf16.msra.mxu0 %v510
      %632 = vmatpush.bf16.msra.mxu0 %v509
      %633 = vmatmul.bf16.gmra.mxu0 %v327
      %v634 = vpop.f32.mrf.mxu0
      %v635 = vadd.f32 %v601, %v634
      %v636 = vpop.f32.mrf.mxu0
      %v637 = vadd.f32 %v603, %v636
      %638 = vmatmul.bf16.gmra.mxu0 %v331
      %v639 = vpop.f32.mrf.mxu0
      %v640 = vadd.f32 %v606, %v639
      %v641 = vpop.f32.mrf.mxu0
      %v642 = vadd.f32 %v608, %v641
      %643 = vmatmul.bf16.gmra.mxu0 %v335
      %v644 = vpop.f32.mrf.mxu0
      %v645 = vadd.f32 %v611, %v644
      %v646 = vpop.f32.mrf.mxu0
      %v647 = vadd.f32 %v613, %v646
      %648 = vmatmul.bf16.gmra.mxu0 %v339
      %v649 = vpop.f32.mrf.mxu0
      %v650 = vadd.f32 %v616, %v649
      %v651 = vpop.f32.mrf.mxu0
      %v652 = vadd.f32 %v618, %v651
      %653 = vmatmul.bf16.gmra.mxu0 %v343
      %v654 = vpop.f32.mrf.mxu0
      %v655 = vadd.f32 %v621, %v654
      %v656 = vpop.f32.mrf.mxu0
      %v657 = vadd.f32 %v623, %v656
      %658 = vdwg.mxu0
      %659 = vmatpush.bf16.msra.mxu0 %v524
      %660 = vmatpush.bf16.msra.mxu0 %v523
      %661 = vmatpush.bf16.msra.mxu0 %v522
      %662 = vmatpush.bf16.msra.mxu0 %v521
      %663 = vmatpush.bf16.msra.mxu0 %v520
      %664 = vmatpush.bf16.msra.mxu0 %v519
      %665 = vmatpush.bf16.msra.mxu0 %v518
      %666 = vmatpush.bf16.msra.mxu0 %v517
      %667 = vmatmul.bf16.gmra.mxu0 %v328
      %v668 = vpop.f32.mrf.mxu0
      %v669 = vadd.f32 %v635, %v668
      %v670 = vpop.f32.mrf.mxu0
      %v671 = vadd.f32 %v637, %v670
      %672 = vmatmul.bf16.gmra.mxu0 %v332
      %v673 = vpop.f32.mrf.mxu0
      %v674 = vadd.f32 %v640, %v673
      %v675 = vpop.f32.mrf.mxu0
      %v676 = vadd.f32 %v642, %v675
      %677 = vmatmul.bf16.gmra.mxu0 %v336
      %v678 = vpop.f32.mrf.mxu0
      %v679 = vadd.f32 %v645, %v678
      %v680 = vpop.f32.mrf.mxu0
      %v681 = vadd.f32 %v647, %v680
      %682 = vmatmul.bf16.gmra.mxu0 %v340
      %v683 = vpop.f32.mrf.mxu0
      %v684 = vadd.f32 %v650, %v683
      %v685 = vpop.f32.mrf.mxu0
      %v686 = vadd.f32 %v652, %v685
      %687 = vmatmul.bf16.gmra.mxu0 %v344
      %v688 = vpop.f32.mrf.mxu0
      %v689 = vadd.f32 %v655, %v688
      %v690 = vpop.f32.mrf.mxu0
      %v691 = vadd.f32 %v657, %v690
      %692 = vdwg.mxu0
      %v693 = vmax.f32 %v669, 0.0
      %v694 = vmax.f32 %v671, 0.0
      %v695 = vmax.f32 %v674, 0.0
      %v696 = vmax.f32 %v676, 0.0
      %v697 = vmax.f32 %v679, 0.0
      %v698 = vmax.f32 %v681, 0.0
      %v699 = vmax.f32 %v684, 0.0
      %v700 = vmax.f32 %v686, 0.0
      %v701 = vmax.f32 %v689, 0.0
      %v702 = vmax.f32 %v691, 0.0
      %v703 = vpack.c.bf16 %v693, %v693
      %v704 = vpack.c.bf16 %v694, %v694
      %v705 = vpack.c.bf16 %v695, %v695
      %v706 = vpack.c.bf16 %v696, %v696
      %v707 = vpack.c.bf16 %v697, %v697
      %v708 = vpack.c.bf16 %v698, %v698
      %v709 = vpack.c.bf16 %v699, %v699
      %v710 = vpack.c.bf16 %v700, %v700
      %v711 = vpack.c.bf16 %v701, %v701
      %v712 = vpack.c.bf16 %v702, %v702
      %713 = vst [vmem:[%s175] sm:$0xf] %v703
      %714 = vst [vmem:[%s175 + $0x4] sm:$0xf] %v704
      %715 = vst [vmem:[%s175 + $0x8] sm:$0xf] %v705
      %716 = vst [vmem:[%s175 + $0xc] sm:$0xf] %v706
      %717 = vst [vmem:[%s175 + $0x10] sm:$0xf] %v707
      %718 = vst [vmem:[%s175 + $0x14] sm:$0xf] %v708
      %719 = vst [vmem:[%s175 + $0x18] sm:$0xf] %v709
      %720 = vst [vmem:[%s175 + $0x1c] sm:$0xf] %v710
      %721 = vst [vmem:[%s175 + $0x20] sm:$0xf] %v711
      %722 = vst [vmem:[%s175 + $0x24] sm:$0xf] %v712
      %s723 = smul.u32 10, %s14
      %p724 = scmp.lt.s32.totalorder %s723, 19
      %s725 = scalar_select %p724, %s723, 19
      %s726 = smul.addr %s725, 4
      %s727 = scalar_lea.vmem %s3, %s726
      // Predicated region
      $region33: #{encoder_forward.4} parent=31 // pred_check
        %p728 = pneg %p100
      $region34: #{encoder_forward.4} parent=31 // pred_check_branch
        %730 = sbr.rel (%p728) target = $region36
      $region35: #{encoder_forward.4} parent=31 // pred_region
        %s731 = smul.u32 10, %s14
      $region36: #{encoder_forward.4} parent=31 // pred_fallthru
        _
    $region32: #{encoder_forward.4} parent=5 // pred_fallthru
      _
    %p732 = scmp.le.s32.totalorder 2, %s9
    // Predicated region
    $region37: #{encoder_forward.4} parent=5 // pred_check
      %p733 = pneg %p732
    $region38: #{encoder_forward.4} parent=5 // pred_check_branch
      %735 = sbr.rel (%p733) target = $region40
    $region39: #{encoder_forward.4} parent=5 // pred_region
      %s736 = ssub.s32 %s9, 2
      // Predicated region
      $region41: #{encoder_forward.4} parent=39 // pred_check
        %p737 = pneg %p106
      $region42: #{encoder_forward.4} parent=39 // pred_check_branch
        %739 = sbr.rel (%p737) target = $region44
      $region43: #{encoder_forward.4} parent=39 // pred_region
        %s740 = smul.u32 10, %s15
        %p741 = scmp.lt.s32.totalorder %s740, 19
        %s742 = scalar_select %p741, %s740, 19
        %s743 = smul.addr %s742, 4
        %s744 = scalar_lea.vmem %s3, %s743
      $region44: #{encoder_forward.4} parent=39 // pred_fallthru
        _
    $region40: #{encoder_forward.4} parent=5 // pred_fallthru
      _
  $region6: #{encoder_forward.4} parent=0 // loop_footer
    %s13 = sadd.s32 1, %s9
  $region7: #{encoder_forward.4} parent=0 // loop_footer_branch
    %8 = sbr.rel target = $region3
  $region8: #{encoder_forward.4} parent=0 // loop_exit
    _

// kernel: encoder_forward.5
$region0: #{encoder_forward.5}
  #allocation0 [shape = 'u32[]', space=smem, size = 0x4, offset = 0x4, fixed_abs, tag = 'smem constant byte address 0x4 - core index']
  #allocation1 [shape = 'u32[72,128]{1,0:T(1,128)}', space=vmem, size = 0x9000, scoped, tag = 'internal scratch']
  %s0 = inlined_call_operand.vmem [shape: bf16[32,640], index: 0, kind: input, shape index: {}]
  %s1 = inlined_call_operand.vmem [shape: bf16[640,128], index: 1, kind: input, shape index: {}]
  %s2 = inlined_call_operand.vmem [shape: f32[1,128], index: 2, kind: input, shape index: {}]
  %s3 = inlined_call_operand.vmem [shape: bf16[32,128], index: 3, kind: output, shape index: {}]
  %s4 = sld [smem:[#allocation0]]
  $region45: #{encoder_forward.5} parent=0
    _
  %s6 = ssub.s32 1, %s4
  %s7 = scalar_select 0, %s6, %s4
  loop: start=0, step=1, limit=4
  $region2: #{encoder_forward.5} parent=0 // loop_pre_header
    _
  $region3: #{encoder_forward.5} parent=0 // loop_header
    %s9 = sphi 0, %s13
    %p10 = scmp.ge.s32.totalorder %s9, 4
    %s19 = sphi 0, %s21
    %s22 = sphi 0, %s19
    %s23 = sphi 0, %s22
    %s39 = sphi 0, %s23
    %s43 = sphi 0, %s43
    %s45 = sphi 0, %s43
    %s46 = sphi 0, %s45
    %s60 = sphi 0, %s46
    %s64 = sphi 0, %s64
    %s66 = sphi 0, %s64
    %s67 = sphi 0, %s66
    %s81 = sphi 0, %s67
    %s87 = sphi 0, %s89
    %s90 = sphi 0, %s87
    %s91 = sphi 0, %s90
    %s107 = sphi 0, %s91
  $region4: #{encoder_forward.5} parent=0 // loop_header_branch
    %12 = sbr.rel (%p10) target = $region8
  $region5: #{encoder_forward.5} parent=0 // loop_body
    %s14 = ssub.s32 %s9, 1
    %s15 = ssub.s32 %s9, 2
    %s16 = sadd.s32 %s9, 1
    %s17 = ssub.s32 %s9, %s16
    %p18 = scmp.eq.s32.totalorder %s17, 0
    %s20 = sadd.s32 %s19, 1
    %s21 = scalar_select %p18, %s19, %s20
    %p24 = pneg %p18
    %p25 = scmp.eq.s32.totalorder %s9, 1
    %p26 = por %p24, %p25
    %p27 = scmp.ne.s32.totalorder %s19, %s22
    %p28 = scmp.eq.s32.totalorder %s9, 0
    %p29 = por %p27, %p28
    %p30 = scmp.ne.s32.totalorder %s19, %s22
    %p31 = scmp.eq.s32.totalorder %s14, 1
    %p32 = por %p30, %p31
    %p33 = scmp.ne.s32.totalorder %s22, %s23
    %p34 = scmp.eq.s32.totalorder %s14, 0
    %p35 = por %p33, %p34
    %p36 = scmp.ne.s32.totalorder %s22, %s23
    %p37 = scmp.eq.s32.totalorder %s15, 1
    %p38 = por %p36, %p37
    %p40 = scmp.ne.s32.totalorder %s23, %s39
    %p41 = scmp.eq.s32.totalorder %s15, 0
    %p42 = por %p40, %p41
    %s44 = sadd.s32 %s43, 1
    %p47 = scmp.eq.s32.totalorder %s9, 1
    %p48 = scmp.ne.s32.totalorder %s43, %s45
    %p49 = scmp.eq.s32.totalorder %s9, 0
    %p50 = por %p48, %p49
    %p51 = scmp.ne.s32.totalorder %s43, %s45
    %p52 = scmp.eq.s32.totalorder %s14, 1
    %p53 = por %p51, %p52
    %p54 = scmp.ne.s32.totalorder %s45, %s46
    %p55 = scmp.eq.s32.totalorder %s14, 0
    %p56 = por %p54, %p55
    %p57 = scmp.ne.s32.totalorder %s45, %s46
    %p58 = scmp.eq.s32.totalorder %s15, 1
    %p59 = por %p57, %p58
    %p61 = scmp.ne.s32.totalorder %s46, %s60
    %p62 = scmp.eq.s32.totalorder %s15, 0
    %p63 = por %p61, %p62
    %s65 = sadd.s32 %s64, 1
    %p68 = scmp.eq.s32.totalorder %s9, 1
    %p69 = scmp.ne.s32.totalorder %s64, %s66
    %p70 = scmp.eq.s32.totalorder %s9, 0
    %p71 = por %p69, %p70
    %p72 = scmp.ne.s32.totalorder %s64, %s66
    %p73 = scmp.eq.s32.totalorder %s14, 1
    %p74 = por %p72, %p73
    %p75 = scmp.ne.s32.totalorder %s66, %s67
    %p76 = scmp.eq.s32.totalorder %s14, 0
    %p77 = por %p75, %p76
    %p78 = scmp.ne.s32.totalorder %s66, %s67
    %p79 = scmp.eq.s32.totalorder %s15, 1
    %p80 = por %p78, %p79
    %p82 = scmp.ne.s32.totalorder %s67, %s81
    %p83 = scmp.eq.s32.totalorder %s15, 0
    %p84 = por %p82, %p83
    %s85 = ssub.s32 %s9, %s16
    %p86 = scmp.eq.s32.totalorder %s85, 0
    %s88 = sadd.s32 %s87, 1
    %s89 = scalar_select %p86, %s87, %s88
    %p92 = pneg %p86
    %p93 = scmp.eq.s32.totalorder %s9, 1
    %p94 = por %p92, %p93
    %p95 = scmp.ne.s32.totalorder %s87, %s90
    %p96 = scmp.eq.s32.totalorder %s9, 0
    %p97 = por %p95, %p96
    %p98 = scmp.ne.s32.totalorder %s87, %s90
    %p99 = scmp.eq.s32.totalorder %s14, 1
    %p100 = por %p98, %p99
    %p101 = scmp.ne.s32.totalorder %s90, %s91
    %p102 = scmp.eq.s32.totalorder %s14, 0
    %p103 = por %p101, %p102
    %p104 = scmp.ne.s32.totalorder %s90, %s91
    %p105 = scmp.eq.s32.totalorder %s15, 1
    %p106 = por %p104, %p105
    %p108 = scmp.ne.s32.totalorder %s91, %s107
    %p109 = scmp.eq.s32.totalorder %s15, 0
    %p110 = por %p108, %p109
    %p111 = scmp.le.s32.totalorder 1, %s9
    %p112 = scmp.lt.s32.totalorder %s9, 3
    %p113 = pnand %p111, %p112
    %p114 = pneg %p113
    // Predicated region
    $region9: #{encoder_forward.5} parent=5 // pred_check
      _
    $region10: #{encoder_forward.5} parent=5 // pred_check_branch
      %116 = sbr.rel (%p113) target = $region12
    $region11: #{encoder_forward.5} parent=5 // pred_region
      %s117 = ssub.s32 %s9, 1
      // Predicated region
      $region13: #{encoder_forward.5} parent=11 // pred_check
        %p118 = pneg %p56
      $region14: #{encoder_forward.5} parent=11 // pred_check_branch
        %120 = sbr.rel (%p118) target = $region16
      $region15: #{encoder_forward.5} parent=11 // pred_region
        _
      $region16: #{encoder_forward.5} parent=11 // pred_fallthru
        _
      // Predicated region
      $region17: #{encoder_forward.5} parent=11 // pred_check
        %p121 = pneg %p77
      $region18: #{encoder_forward.5} parent=11 // pred_check_branch
        %123 = sbr.rel (%p121) target = $region20
      $region19: #{encoder_forward.5} parent=11 // pred_region
        _
      $region20: #{encoder_forward.5} parent=11 // pred_fallthru
        _
    $region12: #{encoder_forward.5} parent=5 // pred_fallthru
      _
    %p124 = scmp.lt.s32.totalorder %s9, 2
    // Predicated region
    $region21: #{encoder_forward.5} parent=5 // pred_check
      %p125 = pneg %p124
    $region22: #{encoder_forward.5} parent=5 // pred_check_branch
      %127 = sbr.rel (%p125) target = $region24
    $region23: #{encoder_forward.5} parent=5 // pred_region
      // Predicated region
      $region25: #{encoder_forward.5} parent=23 // pred_check
        %p128 = pneg %p29
      $region26: #{encoder_forward.5} parent=23 // pred_check_branch
        %130 = sbr.rel (%p128) target = $region28
      $region27: #{encoder_forward.5} parent=23 // pred_region
        %s131 = smul.u32 2, %s9
        %p132 = scmp.lt.s32.totalorder %s131, 3
        %s133 = scalar_select %p132, %s131, 3
        %s134 = smul.addr %s133, 5
        %s135 = smul.addr %s134, 4
        %s136 = scalar_lea.vmem %s0, %s135
        %s137 = smul.u32 2, %s9
      $region28: #{encoder_forward.5} parent=23 // pred_fallthru
        _
    $region24: #{encoder_forward.5} parent=5 // pred_fallthru
      _
    %p138 = scmp.le.s32.totalorder 1, %s9
    %p139 = scmp.lt.s32.totalorder %s9, 3
    %p140 = pnand %p138, %p139
    %p141 = pneg %p140
    // Predicated region
    $region29: #{encoder_forward.5} parent=5 // pred_check
      _
    $region30: #{encoder_forward.5} parent=5 // pred_check_branch
      %143 = sbr.rel (%p140) target = $region32
    $region31: #{encoder_forward.5} parent=5 // pred_region
      %s144 = ssub.s32 %s9, 1
      %s145 = smul.u32 2, %s14
      %p146 = scmp.lt.s32.totalorder %s145, 3
      %s147 = scalar_select %p146, %s145, 3
      %s148 = smul.addr %s147, 5
      %s149 = smul.addr %s148, 4
      %s150 = scalar_lea.vmem %s0, %s149
      %p151 = pneg %p35
      %p152 = pneg %p32
      %p153 = pneg %p56
      %p154 = pneg %p53
      %p155 = pneg %p77
      %p156 = pneg %p74
      %p157 = pneg %p103
      %p158 = pneg %p100
      %s159 = smul.u32 2, %s14
      %p160 = scmp.lt.s32.totalorder %s159, 3
      %s161 = scalar_select %p160, %s159, 3
      %s162 = smul.addr %s161, 4
      %s163 = scalar_lea.vmem %s3, %s162
      %s164 = smul.u32 2, %s14
      %p165 = scmp.lt.s32.totalorder %s164, 3
      %s166 = scalar_select %p165, %s164, 3
      %s167 = smul.addr %s166, 5
      %s168 = smul.addr %s167, 4
      %s169 = scalar_lea.vmem %s0, %s168
      %s170 = smul.u32 2, %s14
      %s171 = smul.u32 2, %s14
      %p172 = scmp.lt.s32.totalorder %s171, 3
      %s173 = scalar_select %p172, %s171, 3
      %s174 = smul.addr %s173, 4
      %s175 = scalar_lea.vmem %s3, %s174
      %s176 = smul.u32 2, %s14
      %v177 = vld [vmem:[%s169] sm:$0xff]
      %v178 = vld [vmem:[%s169 + $0x8] sm:$0xff]
      %v179 = vld [vmem:[%s169 + $0x10] sm:$0xf]
      %v180 = vld [vmem:[%s169 + $0x14] sm:$0xff]
      %v181 = vld [vmem:[%s169 + $0x1c] sm:$0xff]
      %v182 = vld [vmem:[%s169 + $0x24] sm:$0xf]
      %v183 = vld [vmem:[%s1] sm:$0xf]
      %v184 = vld [vmem:[%s1 + $0x4] sm:$0xf]
      %v185 = vld [vmem:[%s1 + $0x8] sm:$0xf]
      %v186 = vld [vmem:[%s1 + $0xc] sm:$0xf]
      %v187 = vld [vmem:[%s1 + $0x10] sm:$0xf]
      %v188 = vld [vmem:[%s1 + $0x14] sm:$0xf]
      %v189 = vld [vmem:[%s1 + $0x18] sm:$0xf]
      %v190 = vld [vmem:[%s1 + $0x1c] sm:$0xf]
      %v191 = vld [vmem:[%s1 + $0x20] sm:$0xf]
      %v192 = vld [vmem:[%s1 + $0x24] sm:$0xf]
      %v193 = vld [vmem:[%s1 + $0x28] sm:$0xf]
      %v194 = vld [vmem:[%s1 + $0x2c] sm:$0xf]
      %v195 = vld [vmem:[%s1 + $0x30] sm:$0xf]
      %v196 = vld [vmem:[%s1 + $0x34] sm:$0xf]
      %v197 = vld [vmem:[%s1 + $0x38] sm:$0xf]
      %v198 = vld [vmem:[%s1 + $0x3c] sm:$0xf]
      %v199 = vld [vmem:[%s1 + $0x40] sm:$0xf]
      %v200 = vld [vmem:[%s1 + $0x44] sm:$0xf]
      %v201 = vld [vmem:[%s1 + $0x48] sm:$0xf]
      %v202 = vld [vmem:[%s1 + $0x4c] sm:$0xf]
      %v203 = vld [vmem:[%s1 + $0x50] sm:$0xf]
      %v204 = vld [vmem:[%s1 + $0x54] sm:$0xf]
      %v205 = vld [vmem:[%s1 + $0x58] sm:$0xf]
      %v206 = vld [vmem:[%s1 + $0x5c] sm:$0xf]
      %v207 = vld [vmem:[%s1 + $0x60] sm:$0xf]
      %v208 = vld [vmem:[%s1 + $0x64] sm:$0xf]
      %v209 = vld [vmem:[%s1 + $0x68] sm:$0xf]
      %v210 = vld [vmem:[%s1 + $0x6c] sm:$0xf]
      %v211 = vld [vmem:[%s1 + $0x70] sm:$0xf]
      %v212 = vld [vmem:[%s1 + $0x74] sm:$0xf]
      %v213 = vld [vmem:[%s1 + $0x78] sm:$0xf]
      %v214 = vld [vmem:[%s1 + $0x7c] sm:$0xf]
      %v215 = vld [vmem:[%s1 + $0x80] sm:$0xf]
      %v216 = vld [vmem:[%s1 + $0x84] sm:$0xf]
      %v217 = vld [vmem:[%s1 + $0x88] sm:$0xf]
      %v218 = vld [vmem:[%s1 + $0x8c] sm:$0xf]
      %v219 = vld [vmem:[%s1 + $0x90] sm:$0xf]
      %v220 = vld [vmem:[%s1 + $0x94] sm:$0xf]
      %v221 = vld [vmem:[%s1 + $0x98] sm:$0xf]
      %v222 = vld [vmem:[%s1 + $0x9c] sm:$0xf]
      %v223 = vld [vmem:[%s1 + $0xa0] sm:$0xf]
      %v224 = vld [vmem:[%s1 + $0xa4] sm:$0xf]
      %v225 = vld [vmem:[%s1 + $0xa8] sm:$0xf]
      %v226 = vld [vmem:[%s1 + $0xac] sm:$0xf]
      %v227 = vld [vmem:[%s1 + $0xb0] sm:$0xf]
      %v228 = vld [vmem:[%s1 + $0xb4] sm:$0xf]
      %v229 = vld [vmem:[%s1 + $0xb8] sm:$0xf]
      %v230 = vld [vmem:[%s1 + $0xbc] sm:$0xf]
      %v231 = vld [vmem:[%s1 + $0xc0] sm:$0xf]
      %v232 = vld [vmem:[%s1 + $0xc4] sm:$0xf]
      %v233 = vld [vmem:[%s1 + $0xc8] sm:$0xf]
      %v234 = vld [vmem:[%s1 + $0xcc] sm:$0xf]
      %v235 = vld [vmem:[%s1 + $0xd0] sm:$0xf]
      %v236 = vld [vmem:[%s1 + $0xd4] sm:$0xf]
      %v237 = vld [vmem:[%s1 + $0xd8] sm:$0xf]
      %v238 = vld [vmem:[%s1 + $0xdc] sm:$0xf]
      %v239 = vld [vmem:[%s1 + $0xe0] sm:$0xf]
      %v240 = vld [vmem:[%s1 + $0xe4] sm:$0xf]
      %v241 = vld [vmem:[%s1 + $0xe8] sm:$0xf]
      %v242 = vld [vmem:[%s1 + $0xec] sm:$0xf]
      %v243 = vld [vmem:[%s1 + $0xf0] sm:$0xf]
      %v244 = vld [vmem:[%s1 + $0xf4] sm:$0xf]
      %v245 = vld [vmem:[%s1 + $0xf8] sm:$0xf]
      %v246 = vld [vmem:[%s1 + $0xfc] sm:$0xf]
      %v247 = vld [vmem:[%s1 + $0x100] sm:$0xf]
      %v248 = vld [vmem:[%s1 + $0x104] sm:$0xf]
      %v249 = vld [vmem:[%s1 + $0x108] sm:$0xf]
      %v250 = vld [vmem:[%s1 + $0x10c] sm:$0xf]
      %v251 = vld [vmem:[%s1 + $0x110] sm:$0xf]
      %v252 = vld [vmem:[%s1 + $0x114] sm:$0xf]
      %v253 = vld [vmem:[%s1 + $0x118] sm:$0xf]
      %v254 = vld [vmem:[%s1 + $0x11c] sm:$0xf]
      %v255 = vld [vmem:[%s1 + $0x120] sm:$0xf]
      %v256 = vld [vmem:[%s1 + $0x124] sm:$0xf]
      %v257 = vld [vmem:[%s1 + $0x128] sm:$0xf]
      %v258 = vld [vmem:[%s1 + $0x12c] sm:$0xf]
      %v259 = vld [vmem:[%s1 + $0x130] sm:$0xf]
      %v260 = vld [vmem:[%s1 + $0x134] sm:$0xf]
      %v261 = vld [vmem:[%s1 + $0x138] sm:$0xf]
      %v262 = vld [vmem:[%s1 + $0x13c] sm:$0xf]
      %v263 = vld [vmem:[%s2] sm:$0x1]
      %v265 = vperm.slane %v263, 0
      %v273 = vunpack.c.l.b16 %v177
      %v274 = vunpack.c.h.b16 %v177
      %v275 = vunpack.c.l.b16 %v178
      %v276 = vunpack.c.h.b16 %v178
      %v277 = vunpack.c.l.b16 %v179
      %v278 = vunpack.c.l.b16 %v180
      %v279 = vunpack.c.h.b16 %v180
      %v280 = vunpack.c.l.b16 %v181
      %v281 = vunpack.c.h.b16 %v181
      %v282 = vunpack.c.l.b16 %v182
      %v283 = vpack.c.b16 %v278, %v273
      %v284 = vpack.c.b16 %v279, %v274
      %v285 = vpack.c.b16 %v280, %v275
      %v286 = vpack.c.b16 %v281, %v276
      %v287 = vpack.c.b16 %v282, %v277
      %v373 = vunpack.c.l.b16 %v183
      %v374 = vunpack.c.l.b16 %v184
      %v375 = vunpack.c.l.b16 %v185
      %v376 = vunpack.c.l.b16 %v186
      %v377 = vunpack.c.l.b16 %v187
      %v378 = vunpack.c.l.b16 %v188
      %v379 = vunpack.c.l.b16 %v189
      %v380 = vunpack.c.l.b16 %v190
      %v381 = vunpack.c.l.b16 %v191
      %v382 = vunpack.c.l.b16 %v192
      %v383 = vunpack.c.l.b16 %v193
      %v384 = vunpack.c.l.b16 %v194
      %v385 = vunpack.c.l.b16 %v195
      %v386 = vunpack.c.l.b16 %v196
      %v387 = vunpack.c.l.b16 %v197
      %v388 = vunpack.c.l.b16 %v198
      %v389 = vunpack.c.l.b16 %v199
      %v390 = vunpack.c.l.b16 %v200
      %v391 = vunpack.c.l.b16 %v201
      %v392 = vunpack.c.l.b16 %v202
      %v393 = vunpack.c.l.b16 %v203
      %v394 = vunpack.c.l.b16 %v204
      %v395 = vunpack.c.l.b16 %v205
      %v396 = vunpack.c.l.b16 %v206
      %v397 = vunpack.c.l.b16 %v207
      %v398 = vunpack.c.l.b16 %v208
      %v399 = vunpack.c.l.b16 %v209
      %v400 = vunpack.c.l.b16 %v210
      %v401 = vunpack.c.l.b16 %v211
      %v402 = vunpack.c.l.b16 %v212
      %v403 = vunpack.c.l.b16 %v213
      %v404 = vunpack.c.l.b16 %v214
      %v405 = vunpack.c.l.b16 %v215
      %v406 = vunpack.c.l.b16 %v216
      %v407 = vunpack.c.l.b16 %v217
      %v408 = vunpack.c.l.b16 %v218
      %v409 = vunpack.c.l.b16 %v219
      %v410 = vunpack.c.l.b16 %v220
      %v411 = vunpack.c.l.b16 %v221
      %v412 = vunpack.c.l.b16 %v222
      %v413 = vunpack.c.l.b16 %v223
      %v414 = vunpack.c.l.b16 %v224
      %v415 = vunpack.c.l.b16 %v225
      %v416 = vunpack.c.l.b16 %v226
      %v417 = vunpack.c.l.b16 %v227
      %v418 = vunpack.c.l.b16 %v228
      %v419 = vunpack.c.l.b16 %v229
      %v420 = vunpack.c.l.b16 %v230
      %v421 = vunpack.c.l.b16 %v231
      %v422 = vunpack.c.l.b16 %v232
      %v423 = vunpack.c.l.b16 %v233
      %v424 = vunpack.c.l.b16 %v234
      %v425 = vunpack.c.l.b16 %v235
      %v426 = vunpack.c.l.b16 %v236
      %v427 = vunpack.c.l.b16 %v237
      %v428 = vunpack.c.l.b16 %v238
      %v429 = vunpack.c.l.b16 %v239
      %v430 = vunpack.c.l.b16 %v240
      %v431 = vunpack.c.l.b16 %v241
      %v432 = vunpack.c.l.b16 %v242
      %v433 = vunpack.c.l.b16 %v243
      %v434 = vunpack.c.l.b16 %v244
      %v435 = vunpack.c.l.b16 %v245
      %v436 = vunpack.c.l.b16 %v246
      %v437 = vunpack.c.l.b16 %v247
      %v438 = vunpack.c.l.b16 %v248
      %v439 = vunpack.c.l.b16 %v249
      %v440 = vunpack.c.l.b16 %v250
      %v441 = vunpack.c.l.b16 %v251
      %v442 = vunpack.c.l.b16 %v252
      %v443 = vunpack.c.l.b16 %v253
      %v444 = vunpack.c.l.b16 %v254
      %v445 = vunpack.c.l.b16 %v255
      %v446 = vunpack.c.l.b16 %v256
      %v447 = vunpack.c.l.b16 %v257
      %v448 = vunpack.c.l.b16 %v258
      %v449 = vunpack.c.l.b16 %v259
      %v450 = vunpack.c.l.b16 %v260
      %v451 = vunpack.c.l.b16 %v261
      %v452 = vunpack.c.l.b16 %v262
      %v453 = vpack.c.b16 %v374, %v373
      %v454 = vpack.c.b16 %v376, %v375
      %v455 = vpack.c.b16 %v378, %v377
      %v456 = vpack.c.b16 %v380, %v379
      %v457 = vpack.c.b16 %v382, %v381
      %v458 = vpack.c.b16 %v384, %v383
      %v459 = vpack.c.b16 %v386, %v385
      %v460 = vpack.c.b16 %v388, %v387
      %v461 = vpack.c.b16 %v390, %v389
      %v462 = vpack.c.b16 %v392, %v391
      %v463 = vpack.c.b16 %v394, %v393
      %v464 = vpack.c.b16 %v396, %v395
      %v465 = vpack.c.b16 %v398, %v397
      %v466 = vpack.c.b16 %v400, %v399
      %v467 = vpack.c.b16 %v402, %v401
      %v468 = vpack.c.b16 %v404, %v403
      %v469 = vpack.c.b16 %v406, %v405
      %v470 = vpack.c.b16 %v408, %v407
      %v471 = vpack.c.b16 %v410, %v409
      %v472 = vpack.c.b16 %v412, %v411
      %v473 = vpack.c.b16 %v414, %v413
      %v474 = vpack.c.b16 %v416, %v415
      %v475 = vpack.c.b16 %v418, %v417
      %v476 = vpack.c.b16 %v420, %v419
      %v477 = vpack.c.b16 %v422, %v421
      %v478 = vpack.c.b16 %v424, %v423
      %v479 = vpack.c.b16 %v426, %v425
      %v480 = vpack.c.b16 %v428, %v427
      %v481 = vpack.c.b16 %v430, %v429
      %v482 = vpack.c.b16 %v432, %v431
      %v483 = vpack.c.b16 %v434, %v433
      %v484 = vpack.c.b16 %v436, %v435
      %v485 = vpack.c.b16 %v438, %v437
      %v486 = vpack.c.b16 %v440, %v439
      %v487 = vpack.c.b16 %v442, %v441
      %v488 = vpack.c.b16 %v444, %v443
      %v489 = vpack.c.b16 %v446, %v445
      %v490 = vpack.c.b16 %v448, %v447
      %v491 = vpack.c.b16 %v450, %v449
      %v492 = vpack.c.b16 %v452, %v451
      %533 = vmatpush.bf16.msra.mxu0 %v460
      %534 = vmatpush.bf16.msra.mxu0 %v459
      %535 = vmatpush.bf16.msra.mxu0 %v458
      %536 = vmatpush.bf16.msra.mxu0 %v457
      %537 = vmatpush.bf16.msra.mxu0 %v456
      %538 = vmatpush.bf16.msra.mxu0 %v455
      %539 = vmatpush.bf16.msra.mxu0 %v454
      %540 = vmatpush.bf16.msra.mxu0 %v453
      %541 = vmatmul.bf16.gmra.mxu0 %v283
      %v542 = vpop.f32.mrf.mxu0
      %v543 = vadd.f32 %v265, %v542
      %v544 = vpop.f32.mrf.mxu0
      %v545 = vadd.f32 %v265, %v544
      %546 = vdwg.mxu0
      %547 = vmatpush.bf16.msra.mxu0 %v468
      %548 = vmatpush.bf16.msra.mxu0 %v467
      %549 = vmatpush.bf16.msra.mxu0 %v466
      %550 = vmatpush.bf16.msra.mxu0 %v465
      %551 = vmatpush.bf16.msra.mxu0 %v464
      %552 = vmatpush.bf16.msra.mxu0 %v463
      %553 = vmatpush.bf16.msra.mxu0 %v462
      %554 = vmatpush.bf16.msra.mxu0 %v461
      %555 = vmatmul.bf16.gmra.mxu0 %v284
      %v556 = vpop.f32.mrf.mxu0
      %v557 = vadd.f32 %v543, %v556
      %v558 = vpop.f32.mrf.mxu0
      %v559 = vadd.f32 %v545, %v558
      %560 = vdwg.mxu0
      %561 = vmatpush.bf16.msra.mxu0 %v476
      %562 = vmatpush.bf16.msra.mxu0 %v475
      %563 = vmatpush.bf16.msra.mxu0 %v474
      %564 = vmatpush.bf16.msra.mxu0 %v473
      %565 = vmatpush.bf16.msra.mxu0 %v472
      %566 = vmatpush.bf16.msra.mxu0 %v471
      %567 = vmatpush.bf16.msra.mxu0 %v470
      %568 = vmatpush.bf16.msra.mxu0 %v469
      %569 = vmatmul.bf16.gmra.mxu0 %v285
      %v570 = vpop.f32.mrf.mxu0
      %v571 = vadd.f32 %v557, %v570
      %v572 = vpop.f32.mrf.mxu0
      %v573 = vadd.f32 %v559, %v572
      %574 = vdwg.mxu0
      %575 = vmatpush.bf16.msra.mxu0 %v484
      %576 = vmatpush.bf16.msra.mxu0 %v483
      %577 = vmatpush.bf16.msra.mxu0 %v482
      %578 = vmatpush.bf16.msra.mxu0 %v481
      %579 = vmatpush.bf16.msra.mxu0 %v480
      %580 = vmatpush.bf16.msra.mxu0 %v479
      %581 = vmatpush.bf16.msra.mxu0 %v478
      %582 = vmatpush.bf16.msra.mxu0 %v477
      %583 = vmatmul.bf16.gmra.mxu0 %v286
      %v584 = vpop.f32.mrf.mxu0
      %v585 = vadd.f32 %v571, %v584
      %v586 = vpop.f32.mrf.mxu0
      %v587 = vadd.f32 %v573, %v586
      %588 = vdwg.mxu0
      %589 = vmatpush.bf16.msra.mxu0 %v492
      %590 = vmatpush.bf16.msra.mxu0 %v491
      %591 = vmatpush.bf16.msra.mxu0 %v490
      %592 = vmatpush.bf16.msra.mxu0 %v489
      %593 = vmatpush.bf16.msra.mxu0 %v488
      %594 = vmatpush.bf16.msra.mxu0 %v487
      %595 = vmatpush.bf16.msra.mxu0 %v486
      %596 = vmatpush.bf16.msra.mxu0 %v485
      %597 = vmatmul.bf16.gmra.mxu0 %v287
      %v598 = vpop.f32.mrf.mxu0
      %v599 = vadd.f32 %v585, %v598
      %v600 = vpop.f32.mrf.mxu0
      %v601 = vadd.f32 %v587, %v600
      %602 = vdwg.mxu0
      %v603 = vmax.f32 %v599, 0.0
      %v604 = vmax.f32 %v601, 0.0
      %v605 = vpack.c.bf16 %v603, %v603
      %v606 = vpack.c.bf16 %v604, %v604
      %607 = vst [vmem:[%s175] sm:$0xf] %v605
      %608 = vst [vmem:[%s175 + $0x4] sm:$0xf] %v606
      %s609 = smul.u32 2, %s14
      %p610 = scmp.lt.s32.totalorder %s609, 3
      %s611 = scalar_select %p610, %s609, 3
      %s612 = smul.addr %s611, 4
      %s613 = scalar_lea.vmem %s3, %s612
      // Predicated region
      $region33: #{encoder_forward.5} parent=31 // pred_check
        %p614 = pneg %p100
      $region34: #{encoder_forward.5} parent=31 // pred_check_branch
        %616 = sbr.rel (%p614) target = $region36
      $region35: #{encoder_forward.5} parent=31 // pred_region
        %s617 = smul.u32 2, %s14
      $region36: #{encoder_forward.5} parent=31 // pred_fallthru
        _
    $region32: #{encoder_forward.5} parent=5 // pred_fallthru
      _
    %p618 = scmp.le.s32.totalorder 2, %s9
    // Predicated region
    $region37: #{encoder_forward.5} parent=5 // pred_check
      %p619 = pneg %p618
    $region38: #{encoder_forward.5} parent=5 // pred_check_branch
      %621 = sbr.rel (%p619) target = $region40
    $region39: #{encoder_forward.5} parent=5 // pred_region
      %s622 = ssub.s32 %s9, 2
      // Predicated region
      $region41: #{encoder_forward.5} parent=39 // pred_check
        %p623 = pneg %p106
      $region42: #{encoder_forward.5} parent=39 // pred_check_branch
        %625 = sbr.rel (%p623) target = $region44
      $region43: #{encoder_forward.5} parent=39 // pred_region
        %s626 = smul.u32 2, %s15
        %p627 = scmp.lt.s32.totalorder %s626, 3
        %s628 = scalar_select %p627, %s626, 3
        %s629 = smul.addr %s628, 4
        %s630 = scalar_lea.vmem %s3, %s629
      $region44: #{encoder_forward.5} parent=39 // pred_fallthru
        _
    $region40: #{encoder_forward.5} parent=5 // pred_fallthru
      _
  $region6: #{encoder_forward.5} parent=0 // loop_footer
    %s13 = sadd.s32 1, %s9
  $region7: #{encoder_forward.5} parent=0 // loop_footer_branch
    %8 = sbr.rel target = $region3
  $region8: #{encoder_forward.5} parent=0 // loop_exit
    _

</llo_original>
